<compile_context>
chip_gen: v5e
topology: v5e:2x2
jax: 0.10.0
libtpu: 0.0.40
codegen_flags: <defaults>
</compile_context>

<pallas_src>
import jax
import jax.numpy as jnp
from jax.experimental import pallas as pl
from jax.experimental.pallas import tpu as pltpu

# Problem sizes (small, consistent with the module: channels divisible by groups).
N = 2          # batch
C = 16         # channels (in == out)
H = 16
W = 16
K = 5          # kernel size
PAD = 2        # padding
G = 8          # groups
CG = C // G    # channels per group
EPS = 1e-5

HP = H + 2 * PAD
WP = W + 2 * PAD
KROW = K * WP * C     # 5 * 20 * 16 = 1600   (contraction depth of the conv matmul)
WC = W * C            # 256                  (lane-dense output width)
NH = N * H            # 32                   (all rows of all samples, one matmul)


def inspired_block_kernel(lhs_ref, wmat_ref, avg_ref, params_ref, o_ref):
    """Single grid step, both batch samples at once.

    lhs_ref    : (N*H, K*WP*C) bf16  row-im2col of the zero-padded NHWC input
    wmat_ref   : (K*WP*C, W*C) bf16  Toeplitz-structured standardized conv weight
    avg_ref    : (W*C, W*C)    f32   group-averaging matrix (per-(w,c) -> group mean)
    params_ref : (8, W*C)      f32   row 0 = conv bias, row 1 = gamma, row 2 = beta
    o_ref      : (N*H, W*C)    f32   lane-dense output
    """
    params = params_ref[...]
    bias = params[0:1, :]
    gamma = params[1:2, :]
    beta = params[2:3, :]

    # --- convolution + bias: one bf16 MXU matmul, f32 accumulation, lane-dense ---
    y = jnp.dot(lhs_ref[...], wmat_ref[...],
                preferred_element_type=jnp.float32) + bias          # (N*H, W*C)

    # --- one-pass per-sample GroupNorm statistics ---
    # For each sample: column sums of y and y*y (independent of the mean),
    # stacked into one small LHS and reduced per-group with a single matmul.
    y2 = y * y
    stat_rows = []
    for n in range(N):                                   # static unroll (N = 2)
        lo = n * H
        stat_rows.append(jnp.sum(y[lo:lo + H], axis=0, keepdims=True))
        stat_rows.append(jnp.sum(y2[lo:lo + H], axis=0, keepdims=True))
    stats = jnp.concatenate(stat_rows, axis=0)                       # (2N, W*C)
    gstats = jnp.dot(stats, avg_ref[...],
                     preferred_element_type=jnp.float32)             # (2N, W*C)

    # --- normalize + affine + ReLU, single lane-dense store ---
    outs = []
    for n in range(N):
        mean = gstats[2 * n:2 * n + 1, :]                            # (1, W*C)
        ex2 = gstats[2 * n + 1:2 * n + 2, :]                         # (1, W*C)
        var = ex2 - mean * mean                                      # biased variance
        scale = jax.lax.rsqrt(var + EPS) * gamma
        shift = beta - mean * scale
        outs.append(jnp.maximum(y[n * H:(n + 1) * H] * scale + shift, 0.0))
    o_ref[...] = jnp.concatenate(outs, axis=0).astype(o_ref.dtype)


def weight_standardize(weight_oihw):
    """WSConv2d weight standardization (matches the PyTorch reference)."""
    wm = jnp.mean(weight_oihw, axis=(1, 2, 3), keepdims=True)
    wc = weight_oihw - wm
    # torch.std default is unbiased (ddof=1); eps is added to the std.
    std = jnp.std(wc.reshape(wc.shape[0], -1), axis=1, ddof=1).reshape(-1, 1, 1, 1) + EPS
    return wc / std


@jax.jit
def inspired_block(x_nchw, weight_oihw, bias, gamma, beta):
    """Forward pass of InspiredBlock.  x_nchw: (N, C, H, W) float32."""
    # ---- parameter preprocessing (plain JAX under jit, fused/hoisted by XLA) ----
    w_std = weight_standardize(weight_oihw)
    w_hwio = jnp.transpose(w_std, (2, 3, 1, 0)).astype(jnp.float32)   # (K, K, Cin, Cout)

    # Toeplitz-structured conv matrix: wmat[(kh, wp, ci), (w, co)] =
    #   w_hwio[kh, wp - w, ci, co] if 0 <= wp - w < K else 0
    wmat = jnp.zeros((K, WP, C, W, C), jnp.float32)
    for w in range(W):
        wmat = wmat.at[:, w:w + K, :, w, :].set(w_hwio)
    wmat = wmat.reshape(KROW, WC).astype(jnp.bfloat16)

    # Group-averaging matrix: avg[(w,c), (w',c')] = [group(c)==group(c')] / (H*W*CG)
    ch = jnp.arange(C)
    same_group = ((ch[:, None] // CG) == (ch[None, :] // CG)).astype(jnp.float32)
    avg = jnp.tile(same_group, (W, W)) / float(H * W * CG)            # (W*C, W*C)

    # Packed parameter slab: row 0 = bias, row 1 = gamma, row 2 = beta (tiled W times).
    params = jnp.zeros((8, WC), jnp.float32)
    params = params.at[0].set(jnp.tile(bias.astype(jnp.float32), W))
    params = params.at[1].set(jnp.tile(gamma.astype(jnp.float32), W))
    params = params.at[2].set(jnp.tile(beta.astype(jnp.float32), W))

    # ---- input preprocessing: pad + row-im2col, both samples stacked on rows ----
    x = jnp.transpose(x_nchw, (0, 2, 3, 1)).astype(jnp.float32)       # NHWC
    xp = jnp.pad(x, ((0, 0), (PAD, PAD), (PAD, PAD), (0, 0)))         # (N, HP, WP, C)
    rows = jnp.arange(H)[:, None] + jnp.arange(K)[None, :]            # (H, K)
    lhs = xp[:, rows].reshape(NH, KROW).astype(jnp.bfloat16)          # (N*H, K*WP*C)

    out = pl.pallas_call(
        inspired_block_kernel,
        out_shape=jax.ShapeDtypeStruct((NH, WC), jnp.float32),
        grid_spec=pltpu.PrefetchScalarGridSpec(
            num_scalar_prefetch=0,
            grid=(1,),
            in_specs=[
                pl.BlockSpec((NH, KROW), lambda i: (0, 0)),
                pl.BlockSpec((KROW, WC), lambda i: (0, 0)),
                pl.BlockSpec((WC, WC), lambda i: (0, 0)),
                pl.BlockSpec((8, WC), lambda i: (0, 0)),
            ],
            out_specs=pl.BlockSpec((NH, WC), lambda i: (0, 0)),
        ),
        compiler_params=pltpu.CompilerParams(dimension_semantics=("arbitrary",)),
    )(lhs, wmat, avg, params)

    out = out.reshape(N, H, W, C)                                     # undo (w,c) packing
    return jnp.transpose(out, (0, 3, 1, 2))                           # back to NCHW


def reference(x_nchw, weight_oihw, bias, gamma, beta):
    """Pure-JAX f32 reference for verification."""
    w_std = weight_standardize(weight_oihw)
    w_hwio = jnp.transpose(w_std, (2, 3, 1, 0))
    x = jnp.transpose(x_nchw, (0, 2, 3, 1))
    y = jax.lax.conv_general_dilated(
        x, w_hwio, window_strides=(1, 1), padding=((PAD, PAD), (PAD, PAD)),
        dimension_numbers=("NHWC", "HWIO", "NHWC"))
    y = y + bias.reshape(1, 1, 1, C)
    yg = y.reshape(N, H, W, G, CG)
    mean = jnp.mean(yg, axis=(1, 2, 4), keepdims=True)
    var = jnp.mean((yg - mean) ** 2, axis=(1, 2, 4), keepdims=True)
    yn = (yg - mean) / jnp.sqrt(var + EPS)
    yn = yn.reshape(N, H, W, C) * gamma.reshape(1, 1, 1, C) + beta.reshape(1, 1, 1, C)
    yn = jnp.maximum(yn, 0.0)
    return jnp.transpose(yn, (0, 3, 1, 2))


if __name__ == "__main__":
    key = jax.random.PRNGKey(0)
    k1, k2, k3, k4, k5 = jax.random.split(key, 5)

    # Deterministic synthetic parameters (shapes from InspiredBlock.__init__)
    x = jax.random.normal(k1, (N, C, H, W), jnp.float32)
    weight = jax.random.normal(k2, (C, C, K, K), jnp.float32) * 0.1   # OIHW
    bias = jax.random.normal(k3, (C,), jnp.float32) * 0.1
    gamma = 1.0 + jax.random.normal(k4, (C,), jnp.float32) * 0.1
    beta = jax.random.normal(k5, (C,), jnp.float32) * 0.1

    out = inspired_block(x, weight, bias, gamma, beta)
    out = jax.block_until_ready(out)

    ref = jax.block_until_ready(reference(x, weight, bias, gamma, beta))
    max_err = float(jnp.max(jnp.abs(out - ref)))
    assert out.shape == (N, C, H, W), out.shape
    # bf16 conv operands (f32 accumulation) vs. f32 reference -> relaxed tolerance.
    assert max_err < 5e-2, f"max abs error {max_err}"

    print("KERNEL_OK")
</pallas_src>

<mosaic_0001>
module attributes {stable_mosaic.version = 11 : i64} {
  func.func @inspired_block_kernel(%arg0: i32, %arg1: memref<32x1600xbf16, #tpu.memory_space<vmem>>, %arg2: memref<1600x256xbf16, #tpu.memory_space<vmem>>, %arg3: memref<256x256xf32, #tpu.memory_space<vmem>>, %arg4: memref<8x256xf32, #tpu.memory_space<vmem>>, %arg5: memref<32x256xf32, #tpu.memory_space<vmem>>) attributes {dimension_semantics = [#tpu.dimension_semantics<arbitrary>], iteration_bounds = array<i64: 1>, scalar_prefetch = 0 : i64, scratch_operands = 0 : i64, tpu.core_type = #tpu.core_type<tc>, window_params = [{pipeline_mode = #tpu.pipeline_mode<synchronous>, transform_indices = @transform_0, window_bounds = array<i64: 32, 1600>}, {pipeline_mode = #tpu.pipeline_mode<synchronous>, transform_indices = @transform_1, window_bounds = array<i64: 1600, 256>}, {pipeline_mode = #tpu.pipeline_mode<synchronous>, transform_indices = @transform_2, window_bounds = array<i64: 256, 256>}, {pipeline_mode = #tpu.pipeline_mode<synchronous>, transform_indices = @transform_3, window_bounds = array<i64: 8, 256>}, {pipeline_mode = #tpu.pipeline_mode<synchronous>, transform_indices = @transform_4, window_bounds = array<i64: 32, 256>}]} {
    %c0 = arith.constant 0 : index
    %c0_0 = arith.constant 0 : index
    %0 = vector.load %arg4[%c0, %c0_0] : memref<8x256xf32, #tpu.memory_space<vmem>>, vector<8x256xf32>
    %1 = vector.extract_strided_slice %0 {offsets = [0, 0], sizes = [1, 256], strides = [1, 1]} : vector<8x256xf32> to vector<1x256xf32>
    %2 = vector.extract_strided_slice %0 {offsets = [1, 0], sizes = [1, 256], strides = [1, 1]} : vector<8x256xf32> to vector<1x256xf32>
    %3 = vector.extract_strided_slice %0 {offsets = [2, 0], sizes = [1, 256], strides = [1, 1]} : vector<8x256xf32> to vector<1x256xf32>
    %c0_1 = arith.constant 0 : index
    %c0_2 = arith.constant 0 : index
    %4 = vector.load %arg1[%c0_1, %c0_2] : memref<32x1600xbf16, #tpu.memory_space<vmem>>, vector<32x1600xbf16>
    %c0_3 = arith.constant 0 : index
    %c0_4 = arith.constant 0 : index
    %5 = vector.load %arg2[%c0_3, %c0_4] : memref<1600x256xbf16, #tpu.memory_space<vmem>>, vector<1600x256xbf16>
    %cst = arith.constant dense<0.000000e+00> : vector<32x256xf32>
    %6 = tpu.matmul %4, %5, %cst {dimension_numbers = #tpu.dot_dimension_numbers<[1], [0], [0], [1], [0, 0, 1, 1], [], []>} : vector<32x1600xbf16>, vector<1600x256xbf16>, vector<32x256xf32> -> vector<32x256xf32>
    %7 = vector.broadcast %1 : vector<1x256xf32> to vector<32x256xf32>
    %8 = arith.addf %6, %7 : vector<32x256xf32>
    %9 = arith.mulf %8, %8 : vector<32x256xf32>
    %10 = vector.extract_strided_slice %8 {offsets = [0, 0], sizes = [16, 256], strides = [1, 1]} : vector<32x256xf32> to vector<16x256xf32>
    %cst_5 = arith.constant dense<0.000000e+00> : vector<256xf32>
    %11 = vector.multi_reduction <add>, %10, %cst_5 [0] : vector<16x256xf32> to vector<256xf32>
    %12 = vector.shape_cast %11 : vector<256xf32> to vector<1x256xf32>
    %13 = vector.extract_strided_slice %9 {offsets = [0, 0], sizes = [16, 256], strides = [1, 1]} : vector<32x256xf32> to vector<16x256xf32>
    %cst_6 = arith.constant dense<0.000000e+00> : vector<256xf32>
    %14 = vector.multi_reduction <add>, %13, %cst_6 [0] : vector<16x256xf32> to vector<256xf32>
    %15 = vector.shape_cast %14 : vector<256xf32> to vector<1x256xf32>
    %16 = vector.extract_strided_slice %8 {offsets = [16, 0], sizes = [16, 256], strides = [1, 1]} : vector<32x256xf32> to vector<16x256xf32>
    %cst_7 = arith.constant dense<0.000000e+00> : vector<256xf32>
    %17 = vector.multi_reduction <add>, %16, %cst_7 [0] : vector<16x256xf32> to vector<256xf32>
    %18 = vector.shape_cast %17 : vector<256xf32> to vector<1x256xf32>
    %19 = vector.extract_strided_slice %9 {offsets = [16, 0], sizes = [16, 256], strides = [1, 1]} : vector<32x256xf32> to vector<16x256xf32>
    %cst_8 = arith.constant dense<0.000000e+00> : vector<256xf32>
    %20 = vector.multi_reduction <add>, %19, %cst_8 [0] : vector<16x256xf32> to vector<256xf32>
    %21 = vector.shape_cast %20 : vector<256xf32> to vector<1x256xf32>
    %22 = tpu.concatenate %12, %15, %18, %21 in 0 : vector<1x256xf32>, vector<1x256xf32>, vector<1x256xf32>, vector<1x256xf32> -> vector<4x256xf32>
    %c0_9 = arith.constant 0 : index
    %c0_10 = arith.constant 0 : index
    %23 = vector.load %arg3[%c0_9, %c0_10] : memref<256x256xf32, #tpu.memory_space<vmem>>, vector<256x256xf32>
    %cst_11 = arith.constant dense<0.000000e+00> : vector<4x256xf32>
    %24 = tpu.matmul %22, %23, %cst_11 {dimension_numbers = #tpu.dot_dimension_numbers<[1], [0], [0], [1], [0, 0, 1, 1], [], []>} : vector<4x256xf32>, vector<256x256xf32>, vector<4x256xf32> -> vector<4x256xf32>
    %25 = vector.extract_strided_slice %24 {offsets = [0, 0], sizes = [1, 256], strides = [1, 1]} : vector<4x256xf32> to vector<1x256xf32>
    %26 = vector.extract_strided_slice %24 {offsets = [1, 0], sizes = [1, 256], strides = [1, 1]} : vector<4x256xf32> to vector<1x256xf32>
    %27 = arith.mulf %25, %25 : vector<1x256xf32>
    %28 = arith.subf %26, %27 : vector<1x256xf32>
    %cst_12 = arith.constant 9.99999974E-6 : f32
    %29 = vector.broadcast %cst_12 : f32 to vector<1x256xf32>
    %30 = arith.addf %28, %29 : vector<1x256xf32>
    %31 = math.rsqrt %30 : vector<1x256xf32>
    %32 = arith.mulf %31, %2 : vector<1x256xf32>
    %33 = arith.mulf %25, %32 : vector<1x256xf32>
    %34 = arith.subf %3, %33 : vector<1x256xf32>
    %35 = vector.extract_strided_slice %8 {offsets = [0, 0], sizes = [16, 256], strides = [1, 1]} : vector<32x256xf32> to vector<16x256xf32>
    %36 = vector.broadcast %32 : vector<1x256xf32> to vector<16x256xf32>
    %37 = arith.mulf %35, %36 : vector<16x256xf32>
    %38 = vector.broadcast %34 : vector<1x256xf32> to vector<16x256xf32>
    %39 = arith.addf %37, %38 : vector<16x256xf32>
    %cst_13 = arith.constant 0.000000e+00 : f32
    %40 = vector.broadcast %cst_13 : f32 to vector<16x256xf32>
    %41 = arith.maximumf %39, %40 : vector<16x256xf32>
    %42 = vector.extract_strided_slice %24 {offsets = [2, 0], sizes = [1, 256], strides = [1, 1]} : vector<4x256xf32> to vector<1x256xf32>
    %43 = vector.extract_strided_slice %24 {offsets = [3, 0], sizes = [1, 256], strides = [1, 1]} : vector<4x256xf32> to vector<1x256xf32>
    %44 = arith.mulf %42, %42 : vector<1x256xf32>
    %45 = arith.subf %43, %44 : vector<1x256xf32>
    %cst_14 = arith.constant 9.99999974E-6 : f32
    %46 = vector.broadcast %cst_14 : f32 to vector<1x256xf32>
    %47 = arith.addf %45, %46 : vector<1x256xf32>
    %48 = math.rsqrt %47 : vector<1x256xf32>
    %49 = arith.mulf %48, %2 : vector<1x256xf32>
    %50 = arith.mulf %42, %49 : vector<1x256xf32>
    %51 = arith.subf %3, %50 : vector<1x256xf32>
    %52 = vector.extract_strided_slice %8 {offsets = [16, 0], sizes = [16, 256], strides = [1, 1]} : vector<32x256xf32> to vector<16x256xf32>
    %53 = vector.broadcast %49 : vector<1x256xf32> to vector<16x256xf32>
    %54 = arith.mulf %52, %53 : vector<16x256xf32>
    %55 = vector.broadcast %51 : vector<1x256xf32> to vector<16x256xf32>
    %56 = arith.addf %54, %55 : vector<16x256xf32>
    %cst_15 = arith.constant 0.000000e+00 : f32
    %57 = vector.broadcast %cst_15 : f32 to vector<16x256xf32>
    %58 = arith.maximumf %56, %57 : vector<16x256xf32>
    %59 = tpu.concatenate %41, %58 in 0 : vector<16x256xf32>, vector<16x256xf32> -> vector<32x256xf32>
    %c0_16 = arith.constant 0 : index
    %c0_17 = arith.constant 0 : index
    %60 = vector.load %arg5[%c0_16, %c0_17] : memref<32x256xf32, #tpu.memory_space<vmem>>, vector<32x256xf32>
    tpu.vector_store %arg5[%c0_16, %c0_17], %59 {strides = array<i32>} : memref<32x256xf32, #tpu.memory_space<vmem>>, vector<32x256xf32>,
    return
  }
  func.func @transform_0(%arg0: i32) -> (i32, i32) {
    %c0_i32 = arith.constant 0 : i32
    %c0_i32_0 = arith.constant 0 : i32
    %c0_i32_1 = arith.constant 0 : i32
    return %c0_i32, %c0_i32_0 : i32, i32
  }
  func.func @transform_1(%arg0: i32) -> (i32, i32) {
    %c0_i32 = arith.constant 0 : i32
    %c0_i32_0 = arith.constant 0 : i32
    %c0_i32_1 = arith.constant 0 : i32
    return %c0_i32, %c0_i32_0 : i32, i32
  }
  func.func @transform_2(%arg0: i32) -> (i32, i32) {
    %c0_i32 = arith.constant 0 : i32
    %c0_i32_0 = arith.constant 0 : i32
    %c0_i32_1 = arith.constant 0 : i32
    return %c0_i32, %c0_i32_0 : i32, i32
  }
  func.func @transform_3(%arg0: i32) -> (i32, i32) {
    %c0_i32 = arith.constant 0 : i32
    %c0_i32_0 = arith.constant 0 : i32
    %c0_i32_1 = arith.constant 0 : i32
    return %c0_i32, %c0_i32_0 : i32, i32
  }
  func.func @transform_4(%arg0: i32) -> (i32, i32) {
    %c0_i32 = arith.constant 0 : i32
    %c0_i32_0 = arith.constant 0 : i32
    %c0_i32_1 = arith.constant 0 : i32
    return %c0_i32, %c0_i32_0 : i32, i32
  }
}

</mosaic_0001>

<llo_original>
// kernel: tile.28
$region0: #{tile.28}
  #allocation0 [shape = 's32[1]{0}', space=sflag, size = 0x4, scoped, tag = 'scoped memory for tile.28']
  %s0 = inlined_call_operand.vmem [shape: f32[16], index: 0, kind: input, shape index: {}]
  %s1 = inlined_call_operand.vmem [shape: f32[16,16], index: 1, kind: output, shape index: {}]
  // Predicated region
  $region2: #{tile.28} parent=0 // pred_check
    _
  $region3: #{tile.28} parent=0 // pred_check_branch
    %3 = sbr.rel (0) target = $region5
  $region4: #{tile.28} parent=0 // pred_region
    _
  $region5: #{tile.28} parent=0 // pred_fallthru
    _
  %v4 = vld [vmem:[%s0] ss:$0 sm:$0xff]
  %5 = vst [vmem:[%s1] sm:$0xff] %v4
  %s6 = scalar_lea.vmem %s1, 8
  %7 = vst [vmem:[%s6] sm:$0xff] %v4

// kernel: inspired_block.1
$region0: #{inspired_block.1}
  #allocation0 [shape = 'u32[]', space=smem, size = 0x4, offset = 0x4, fixed_abs, tag = 'smem constant byte address 0x4 - core index']
  #allocation1 [shape = 'u32[72,128]{1,0:T(1,128)}', space=vmem, size = 0x9000, scoped, tag = 'internal scratch']
  %s0 = inlined_call_operand.vmem [shape: bf16[32,1600], index: 0, kind: input, shape index: {}]
  %s1 = inlined_call_operand.vmem [shape: bf16[1600,256], index: 1, kind: input, shape index: {}]
  %s2 = inlined_call_operand.vmem [shape: f32[256,256], index: 2, kind: input, shape index: {}]
  %s3 = inlined_call_operand.vmem [shape: f32[8,256], index: 3, kind: input, shape index: {}]
  %s4 = inlined_call_operand.vmem [shape: f32[32,256], index: 4, kind: output, shape index: {}]
  %s5 = sld [smem:[#allocation0]]
  $region26: #{inspired_block.1} parent=0
    _
  %s7 = ssub.s32 1, %s5
  %s8 = scalar_select 0, %s7, %s5
  // Predicated region
  $region2: #{inspired_block.1} parent=0 // pred_check
    _
  $region3: #{inspired_block.1} parent=0 // pred_check_branch
    %10 = sbr.rel (0) target = $region5
  $region4: #{inspired_block.1} parent=0 // pred_region
    _
  $region5: #{inspired_block.1} parent=0 // pred_fallthru
    _
  // Predicated region
  $region6: #{inspired_block.1} parent=0 // pred_check
    _
  $region7: #{inspired_block.1} parent=0 // pred_check_branch
    %12 = sbr.rel (0) target = $region9
  $region8: #{inspired_block.1} parent=0 // pred_region
    _
  $region9: #{inspired_block.1} parent=0 // pred_fallthru
    _
  // Predicated region
  $region10: #{inspired_block.1} parent=0 // pred_check
    _
  $region11: #{inspired_block.1} parent=0 // pred_check_branch
    %14 = sbr.rel (0) target = $region13
  $region12: #{inspired_block.1} parent=0 // pred_region
    _
  $region13: #{inspired_block.1} parent=0 // pred_fallthru
    _
  // Predicated region
  $region14: #{inspired_block.1} parent=0 // pred_check
    _
  $region15: #{inspired_block.1} parent=0 // pred_check_branch
    %16 = sbr.rel (0) target = $region17
  $region16: #{inspired_block.1} parent=0 // pred_region
    _
  $region17: #{inspired_block.1} parent=0 // pred_fallthru
    _
  %v18 = vld [vmem:[%s3] sm:$0xff]
  %v19 = vld [vmem:[%s3 + $0x8] sm:$0xff]
  %v20 = vld [vmem:[%s0] sm:$0xff]
  %v21 = vld [vmem:[%s0 + $0x8] sm:$0xff]
  %v22 = vld [vmem:[%s0 + $0x10] sm:$0xff]
  %v23 = vld [vmem:[%s0 + $0x18] sm:$0xff]
  %v24 = vld [vmem:[%s0 + $0x20] sm:$0xff]
  %v25 = vld [vmem:[%s0 + $0x28] sm:$0xff]
  %v26 = vld [vmem:[%s0 + $0x30] sm:$0xf]
  %v27 = vld [vmem:[%s0 + $0x34] sm:$0xff]
  %v28 = vld [vmem:[%s0 + $0x3c] sm:$0xff]
  %v29 = vld [vmem:[%s0 + $0x44] sm:$0xff]
  %v30 = vld [vmem:[%s0 + $0x4c] sm:$0xff]
  %v31 = vld [vmem:[%s0 + $0x54] sm:$0xff]
  %v32 = vld [vmem:[%s0 + $0x5c] sm:$0xff]
  %v33 = vld [vmem:[%s0 + $0x64] sm:$0xf]
  %v34 = vld [vmem:[%s0 + $0x68] sm:$0xff]
  %v35 = vld [vmem:[%s0 + $0x70] sm:$0xff]
  %v36 = vld [vmem:[%s0 + $0x78] sm:$0xff]
  %v37 = vld [vmem:[%s0 + $0x80] sm:$0xff]
  %v38 = vld [vmem:[%s0 + $0x88] sm:$0xff]
  %v39 = vld [vmem:[%s0 + $0x90] sm:$0xff]
  %v40 = vld [vmem:[%s0 + $0x98] sm:$0xf]
  %v41 = vld [vmem:[%s0 + $0x9c] sm:$0xff]
  %v42 = vld [vmem:[%s0 + $0xa4] sm:$0xff]
  %v43 = vld [vmem:[%s0 + $0xac] sm:$0xff]
  %v44 = vld [vmem:[%s0 + $0xb4] sm:$0xff]
  %v45 = vld [vmem:[%s0 + $0xbc] sm:$0xff]
  %v46 = vld [vmem:[%s0 + $0xc4] sm:$0xff]
  %v47 = vld [vmem:[%s0 + $0xcc] sm:$0xf]
  %v48 = vld [vmem:[%s1] sm:$0xff]
  %v49 = vld [vmem:[%s1 + $0x8] sm:$0xff]
  %v50 = vld [vmem:[%s1 + $0x10] sm:$0xff]
  %v51 = vld [vmem:[%s1 + $0x18] sm:$0xff]
  %v52 = vld [vmem:[%s1 + $0x20] sm:$0xff]
  %v53 = vld [vmem:[%s1 + $0x28] sm:$0xff]
  %v54 = vld [vmem:[%s1 + $0x30] sm:$0xff]
  %v55 = vld [vmem:[%s1 + $0x38] sm:$0xff]
  %v56 = vld [vmem:[%s1 + $0x40] sm:$0xff]
  %v57 = vld [vmem:[%s1 + $0x48] sm:$0xff]
  %v58 = vld [vmem:[%s1 + $0x50] sm:$0xff]
  %v59 = vld [vmem:[%s1 + $0x58] sm:$0xff]
  %v60 = vld [vmem:[%s1 + $0x60] sm:$0xff]
  %v61 = vld [vmem:[%s1 + $0x68] sm:$0xff]
  %v62 = vld [vmem:[%s1 + $0x70] sm:$0xff]
  %v63 = vld [vmem:[%s1 + $0x78] sm:$0xff]
  %v64 = vld [vmem:[%s1 + $0x80] sm:$0xff]
  %v65 = vld [vmem:[%s1 + $0x88] sm:$0xff]
  %v66 = vld [vmem:[%s1 + $0x90] sm:$0xff]
  %v67 = vld [vmem:[%s1 + $0x98] sm:$0xff]
  %v68 = vld [vmem:[%s1 + $0xa0] sm:$0xff]
  %v69 = vld [vmem:[%s1 + $0xa8] sm:$0xff]
  %v70 = vld [vmem:[%s1 + $0xb0] sm:$0xff]
  %v71 = vld [vmem:[%s1 + $0xb8] sm:$0xff]
  %v72 = vld [vmem:[%s1 + $0xc0] sm:$0xff]
  %v73 = vld [vmem:[%s1 + $0xc8] sm:$0xff]
  %v74 = vld [vmem:[%s1 + $0xd0] sm:$0xff]
  %v75 = vld [vmem:[%s1 + $0xd8] sm:$0xff]
  %v76 = vld [vmem:[%s1 + $0xe0] sm:$0xff]
  %v77 = vld [vmem:[%s1 + $0xe8] sm:$0xff]
  %v78 = vld [vmem:[%s1 + $0xf0] sm:$0xff]
  %v79 = vld [vmem:[%s1 + $0xf8] sm:$0xff]
  %v80 = vld [vmem:[%s1 + $0x100] sm:$0xff]
  %v81 = vld [vmem:[%s1 + $0x108] sm:$0xff]
  %v82 = vld [vmem:[%s1 + $0x110] sm:$0xff]
  %v83 = vld [vmem:[%s1 + $0x118] sm:$0xff]
  %v84 = vld [vmem:[%s1 + $0x120] sm:$0xff]
  %v85 = vld [vmem:[%s1 + $0x128] sm:$0xff]
  %v86 = vld [vmem:[%s1 + $0x130] sm:$0xff]
  %v87 = vld [vmem:[%s1 + $0x138] sm:$0xff]
  %v88 = vld [vmem:[%s1 + $0x140] sm:$0xff]
  %v89 = vld [vmem:[%s1 + $0x148] sm:$0xff]
  %v90 = vld [vmem:[%s1 + $0x150] sm:$0xff]
  %v91 = vld [vmem:[%s1 + $0x158] sm:$0xff]
  %v92 = vld [vmem:[%s1 + $0x160] sm:$0xff]
  %v93 = vld [vmem:[%s1 + $0x168] sm:$0xff]
  %v94 = vld [vmem:[%s1 + $0x170] sm:$0xff]
  %v95 = vld [vmem:[%s1 + $0x178] sm:$0xff]
  %v96 = vld [vmem:[%s1 + $0x180] sm:$0xff]
  %v97 = vld [vmem:[%s1 + $0x188] sm:$0xff]
  %v98 = vld [vmem:[%s1 + $0x190] sm:$0xff]
  %v99 = vld [vmem:[%s1 + $0x198] sm:$0xff]
  %v100 = vld [vmem:[%s1 + $0x1a0] sm:$0xff]
  %v101 = vld [vmem:[%s1 + $0x1a8] sm:$0xff]
  %v102 = vld [vmem:[%s1 + $0x1b0] sm:$0xff]
  %v103 = vld [vmem:[%s1 + $0x1b8] sm:$0xff]
  %v104 = vld [vmem:[%s1 + $0x1c0] sm:$0xff]
  %v105 = vld [vmem:[%s1 + $0x1c8] sm:$0xff]
  %v106 = vld [vmem:[%s1 + $0x1d0] sm:$0xff]
  %v107 = vld [vmem:[%s1 + $0x1d8] sm:$0xff]
  %v108 = vld [vmem:[%s1 + $0x1e0] sm:$0xff]
  %v109 = vld [vmem:[%s1 + $0x1e8] sm:$0xff]
  %v110 = vld [vmem:[%s1 + $0x1f0] sm:$0xff]
  %v111 = vld [vmem:[%s1 + $0x1f8] sm:$0xff]
  %v112 = vld [vmem:[%s1 + $0x200] sm:$0xff]
  %v113 = vld [vmem:[%s1 + $0x208] sm:$0xff]
  %v114 = vld [vmem:[%s1 + $0x210] sm:$0xff]
  %v115 = vld [vmem:[%s1 + $0x218] sm:$0xff]
  %v116 = vld [vmem:[%s1 + $0x220] sm:$0xff]
  %v117 = vld [vmem:[%s1 + $0x228] sm:$0xff]
  %v118 = vld [vmem:[%s1 + $0x230] sm:$0xff]
  %v119 = vld [vmem:[%s1 + $0x238] sm:$0xff]
  %v120 = vld [vmem:[%s1 + $0x240] sm:$0xff]
  %v121 = vld [vmem:[%s1 + $0x248] sm:$0xff]
  %v122 = vld [vmem:[%s1 + $0x250] sm:$0xff]
  %v123 = vld [vmem:[%s1 + $0x258] sm:$0xff]
  %v124 = vld [vmem:[%s1 + $0x260] sm:$0xff]
  %v125 = vld [vmem:[%s1 + $0x268] sm:$0xff]
  %v126 = vld [vmem:[%s1 + $0x270] sm:$0xff]
  %v127 = vld [vmem:[%s1 + $0x278] sm:$0xff]
  %v128 = vld [vmem:[%s1 + $0x280] sm:$0xff]
  %v129 = vld [vmem:[%s1 + $0x288] sm:$0xff]
  %v130 = vld [vmem:[%s1 + $0x290] sm:$0xff]
  %v131 = vld [vmem:[%s1 + $0x298] sm:$0xff]
  %v132 = vld [vmem:[%s1 + $0x2a0] sm:$0xff]
  %v133 = vld [vmem:[%s1 + $0x2a8] sm:$0xff]
  %v134 = vld [vmem:[%s1 + $0x2b0] sm:$0xff]
  %v135 = vld [vmem:[%s1 + $0x2b8] sm:$0xff]
  %v136 = vld [vmem:[%s1 + $0x2c0] sm:$0xff]
  %v137 = vld [vmem:[%s1 + $0x2c8] sm:$0xff]
  %v138 = vld [vmem:[%s1 + $0x2d0] sm:$0xff]
  %v139 = vld [vmem:[%s1 + $0x2d8] sm:$0xff]
  %v140 = vld [vmem:[%s1 + $0x2e0] sm:$0xff]
  %v141 = vld [vmem:[%s1 + $0x2e8] sm:$0xff]
  %v142 = vld [vmem:[%s1 + $0x2f0] sm:$0xff]
  %v143 = vld [vmem:[%s1 + $0x2f8] sm:$0xff]
  %v144 = vld [vmem:[%s1 + $0x300] sm:$0xff]
  %v145 = vld [vmem:[%s1 + $0x308] sm:$0xff]
  %v146 = vld [vmem:[%s1 + $0x310] sm:$0xff]
  %v147 = vld [vmem:[%s1 + $0x318] sm:$0xff]
  %v148 = vld [vmem:[%s1 + $0x320] sm:$0xff]
  %v149 = vld [vmem:[%s1 + $0x328] sm:$0xff]
  %v150 = vld [vmem:[%s1 + $0x330] sm:$0xff]
  %v151 = vld [vmem:[%s1 + $0x338] sm:$0xff]
  %v152 = vld [vmem:[%s1 + $0x340] sm:$0xff]
  %v153 = vld [vmem:[%s1 + $0x348] sm:$0xff]
  %v154 = vld [vmem:[%s1 + $0x350] sm:$0xff]
  %v155 = vld [vmem:[%s1 + $0x358] sm:$0xff]
  %v156 = vld [vmem:[%s1 + $0x360] sm:$0xff]
  %v157 = vld [vmem:[%s1 + $0x368] sm:$0xff]
  %v158 = vld [vmem:[%s1 + $0x370] sm:$0xff]
  %v159 = vld [vmem:[%s1 + $0x378] sm:$0xff]
  %v160 = vld [vmem:[%s1 + $0x380] sm:$0xff]
  %v161 = vld [vmem:[%s1 + $0x388] sm:$0xff]
  %v162 = vld [vmem:[%s1 + $0x390] sm:$0xff]
  %v163 = vld [vmem:[%s1 + $0x398] sm:$0xff]
  %v164 = vld [vmem:[%s1 + $0x3a0] sm:$0xff]
  %v165 = vld [vmem:[%s1 + $0x3a8] sm:$0xff]
  %v166 = vld [vmem:[%s1 + $0x3b0] sm:$0xff]
  %v167 = vld [vmem:[%s1 + $0x3b8] sm:$0xff]
  %v168 = vld [vmem:[%s1 + $0x3c0] sm:$0xff]
  %v169 = vld [vmem:[%s1 + $0x3c8] sm:$0xff]
  %v170 = vld [vmem:[%s1 + $0x3d0] sm:$0xff]
  %v171 = vld [vmem:[%s1 + $0x3d8] sm:$0xff]
  %v172 = vld [vmem:[%s1 + $0x3e0] sm:$0xff]
  %v173 = vld [vmem:[%s1 + $0x3e8] sm:$0xff]
  %v174 = vld [vmem:[%s1 + $0x3f0] sm:$0xff]
  %v175 = vld [vmem:[%s1 + $0x3f8] sm:$0xff]
  %v176 = vld [vmem:[%s1 + $0x400] sm:$0xff]
  %v177 = vld [vmem:[%s1 + $0x408] sm:$0xff]
  %v178 = vld [vmem:[%s1 + $0x410] sm:$0xff]
  %v179 = vld [vmem:[%s1 + $0x418] sm:$0xff]
  %v180 = vld [vmem:[%s1 + $0x420] sm:$0xff]
  %v181 = vld [vmem:[%s1 + $0x428] sm:$0xff]
  %v182 = vld [vmem:[%s1 + $0x430] sm:$0xff]
  %v183 = vld [vmem:[%s1 + $0x438] sm:$0xff]
  %v184 = vld [vmem:[%s1 + $0x440] sm:$0xff]
  %v185 = vld [vmem:[%s1 + $0x448] sm:$0xff]
  %v186 = vld [vmem:[%s1 + $0x450] sm:$0xff]
  %v187 = vld [vmem:[%s1 + $0x458] sm:$0xff]
  %v188 = vld [vmem:[%s1 + $0x460] sm:$0xff]
  %v189 = vld [vmem:[%s1 + $0x468] sm:$0xff]
  %v190 = vld [vmem:[%s1 + $0x470] sm:$0xff]
  %v191 = vld [vmem:[%s1 + $0x478] sm:$0xff]
  %v192 = vld [vmem:[%s1 + $0x480] sm:$0xff]
  %v193 = vld [vmem:[%s1 + $0x488] sm:$0xff]
  %v194 = vld [vmem:[%s1 + $0x490] sm:$0xff]
  %v195 = vld [vmem:[%s1 + $0x498] sm:$0xff]
  %v196 = vld [vmem:[%s1 + $0x4a0] sm:$0xff]
  %v197 = vld [vmem:[%s1 + $0x4a8] sm:$0xff]
  %v198 = vld [vmem:[%s1 + $0x4b0] sm:$0xff]
  %v199 = vld [vmem:[%s1 + $0x4b8] sm:$0xff]
  %v200 = vld [vmem:[%s1 + $0x4c0] sm:$0xff]
  %v201 = vld [vmem:[%s1 + $0x4c8] sm:$0xff]
  %v202 = vld [vmem:[%s1 + $0x4d0] sm:$0xff]
  %v203 = vld [vmem:[%s1 + $0x4d8] sm:$0xff]
  %v204 = vld [vmem:[%s1 + $0x4e0] sm:$0xff]
  %v205 = vld [vmem:[%s1 + $0x4e8] sm:$0xff]
  %v206 = vld [vmem:[%s1 + $0x4f0] sm:$0xff]
  %v207 = vld [vmem:[%s1 + $0x4f8] sm:$0xff]
  %v208 = vld [vmem:[%s1 + $0x500] sm:$0xff]
  %v209 = vld [vmem:[%s1 + $0x508] sm:$0xff]
  %v210 = vld [vmem:[%s1 + $0x510] sm:$0xff]
  %v211 = vld [vmem:[%s1 + $0x518] sm:$0xff]
  %v212 = vld [vmem:[%s1 + $0x520] sm:$0xff]
  %v213 = vld [vmem:[%s1 + $0x528] sm:$0xff]
  %v214 = vld [vmem:[%s1 + $0x530] sm:$0xff]
  %v215 = vld [vmem:[%s1 + $0x538] sm:$0xff]
  %v216 = vld [vmem:[%s1 + $0x540] sm:$0xff]
  %v217 = vld [vmem:[%s1 + $0x548] sm:$0xff]
  %v218 = vld [vmem:[%s1 + $0x550] sm:$0xff]
  %v219 = vld [vmem:[%s1 + $0x558] sm:$0xff]
  %v220 = vld [vmem:[%s1 + $0x560] sm:$0xff]
  %v221 = vld [vmem:[%s1 + $0x568] sm:$0xff]
  %v222 = vld [vmem:[%s1 + $0x570] sm:$0xff]
  %v223 = vld [vmem:[%s1 + $0x578] sm:$0xff]
  %v224 = vld [vmem:[%s1 + $0x580] sm:$0xff]
  %v225 = vld [vmem:[%s1 + $0x588] sm:$0xff]
  %v226 = vld [vmem:[%s1 + $0x590] sm:$0xff]
  %v227 = vld [vmem:[%s1 + $0x598] sm:$0xff]
  %v228 = vld [vmem:[%s1 + $0x5a0] sm:$0xff]
  %v229 = vld [vmem:[%s1 + $0x5a8] sm:$0xff]
  %v230 = vld [vmem:[%s1 + $0x5b0] sm:$0xff]
  %v231 = vld [vmem:[%s1 + $0x5b8] sm:$0xff]
  %v232 = vld [vmem:[%s1 + $0x5c0] sm:$0xff]
  %v233 = vld [vmem:[%s1 + $0x5c8] sm:$0xff]
  %v234 = vld [vmem:[%s1 + $0x5d0] sm:$0xff]
  %v235 = vld [vmem:[%s1 + $0x5d8] sm:$0xff]
  %v236 = vld [vmem:[%s1 + $0x5e0] sm:$0xff]
  %v237 = vld [vmem:[%s1 + $0x5e8] sm:$0xff]
  %v238 = vld [vmem:[%s1 + $0x5f0] sm:$0xff]
  %v239 = vld [vmem:[%s1 + $0x5f8] sm:$0xff]
  %v240 = vld [vmem:[%s1 + $0x600] sm:$0xff]
  %v241 = vld [vmem:[%s1 + $0x608] sm:$0xff]
  %v242 = vld [vmem:[%s1 + $0x610] sm:$0xff]
  %v243 = vld [vmem:[%s1 + $0x618] sm:$0xff]
  %v244 = vld [vmem:[%s1 + $0x620] sm:$0xff]
  %v245 = vld [vmem:[%s1 + $0x628] sm:$0xff]
  %v246 = vld [vmem:[%s1 + $0x630] sm:$0xff]
  %v247 = vld [vmem:[%s1 + $0x638] sm:$0xff]
  %v248 = vperm.slane %v18, 0
  %v249 = vperm.slane %v19, 0
  %v278 = vunpack.c.l.b16 %v20
  %v279 = vunpack.c.h.b16 %v20
  %v280 = vunpack.c.l.b16 %v21
  %v281 = vunpack.c.h.b16 %v21
  %v282 = vunpack.c.l.b16 %v22
  %v283 = vunpack.c.h.b16 %v22
  %v284 = vunpack.c.l.b16 %v23
  %v285 = vunpack.c.h.b16 %v23
  %v286 = vunpack.c.l.b16 %v24
  %v287 = vunpack.c.h.b16 %v24
  %v288 = vunpack.c.l.b16 %v25
  %v289 = vunpack.c.h.b16 %v25
  %v290 = vunpack.c.l.b16 %v26
  %v291 = vunpack.c.l.b16 %v27
  %v292 = vunpack.c.h.b16 %v27
  %v293 = vunpack.c.l.b16 %v28
  %v294 = vunpack.c.h.b16 %v28
  %v295 = vunpack.c.l.b16 %v29
  %v296 = vunpack.c.h.b16 %v29
  %v297 = vunpack.c.l.b16 %v30
  %v298 = vunpack.c.h.b16 %v30
  %v299 = vunpack.c.l.b16 %v31
  %v300 = vunpack.c.h.b16 %v31
  %v301 = vunpack.c.l.b16 %v32
  %v302 = vunpack.c.h.b16 %v32
  %v303 = vunpack.c.l.b16 %v33
  %v304 = vunpack.c.l.b16 %v34
  %v305 = vunpack.c.h.b16 %v34
  %v306 = vunpack.c.l.b16 %v35
  %v307 = vunpack.c.h.b16 %v35
  %v308 = vunpack.c.l.b16 %v36
  %v309 = vunpack.c.h.b16 %v36
  %v310 = vunpack.c.l.b16 %v37
  %v311 = vunpack.c.h.b16 %v37
  %v312 = vunpack.c.l.b16 %v38
  %v313 = vunpack.c.h.b16 %v38
  %v314 = vunpack.c.l.b16 %v39
  %v315 = vunpack.c.h.b16 %v39
  %v316 = vunpack.c.l.b16 %v40
  %v317 = vunpack.c.l.b16 %v41
  %v318 = vunpack.c.h.b16 %v41
  %v319 = vunpack.c.l.b16 %v42
  %v320 = vunpack.c.h.b16 %v42
  %v321 = vunpack.c.l.b16 %v43
  %v322 = vunpack.c.h.b16 %v43
  %v323 = vunpack.c.l.b16 %v44
  %v324 = vunpack.c.h.b16 %v44
  %v325 = vunpack.c.l.b16 %v45
  %v326 = vunpack.c.h.b16 %v45
  %v327 = vunpack.c.l.b16 %v46
  %v328 = vunpack.c.h.b16 %v46
  %v329 = vunpack.c.l.b16 %v47
  %v330 = vpack.c.b16 %v291, %v278
  %v331 = vpack.c.b16 %v292, %v279
  %v332 = vpack.c.b16 %v293, %v280
  %v333 = vpack.c.b16 %v294, %v281
  %v334 = vpack.c.b16 %v295, %v282
  %v335 = vpack.c.b16 %v296, %v283
  %v336 = vpack.c.b16 %v297, %v284
  %v337 = vpack.c.b16 %v298, %v285
  %v338 = vpack.c.b16 %v299, %v286
  %v339 = vpack.c.b16 %v300, %v287
  %v340 = vpack.c.b16 %v301, %v288
  %v341 = vpack.c.b16 %v302, %v289
  %v342 = vpack.c.b16 %v303, %v290
  %v343 = vpack.c.b16 %v317, %v304
  %v344 = vpack.c.b16 %v318, %v305
  %v345 = vpack.c.b16 %v319, %v306
  %v346 = vpack.c.b16 %v320, %v307
  %v347 = vpack.c.b16 %v321, %v308
  %v348 = vpack.c.b16 %v322, %v309
  %v349 = vpack.c.b16 %v323, %v310
  %v350 = vpack.c.b16 %v324, %v311
  %v351 = vpack.c.b16 %v325, %v312
  %v352 = vpack.c.b16 %v326, %v313
  %v353 = vpack.c.b16 %v327, %v314
  %v354 = vpack.c.b16 %v328, %v315
  %v355 = vpack.c.b16 %v329, %v316
  %v580 = vunpack.c.l.b16 %v48
  %v581 = vunpack.c.h.b16 %v48
  %v582 = vunpack.c.l.b16 %v49
  %v583 = vunpack.c.h.b16 %v49
  %v584 = vunpack.c.l.b16 %v50
  %v585 = vunpack.c.h.b16 %v50
  %v586 = vunpack.c.l.b16 %v51
  %v587 = vunpack.c.h.b16 %v51
  %v588 = vunpack.c.l.b16 %v52
  %v589 = vunpack.c.h.b16 %v52
  %v590 = vunpack.c.l.b16 %v53
  %v591 = vunpack.c.h.b16 %v53
  %v592 = vunpack.c.l.b16 %v54
  %v593 = vunpack.c.h.b16 %v54
  %v594 = vunpack.c.l.b16 %v55
  %v595 = vunpack.c.h.b16 %v55
  %v596 = vunpack.c.l.b16 %v56
  %v597 = vunpack.c.h.b16 %v56
  %v598 = vunpack.c.l.b16 %v57
  %v599 = vunpack.c.h.b16 %v57
  %v600 = vunpack.c.l.b16 %v58
  %v601 = vunpack.c.h.b16 %v58
  %v602 = vunpack.c.l.b16 %v59
  %v603 = vunpack.c.h.b16 %v59
  %v604 = vunpack.c.l.b16 %v60
  %v605 = vunpack.c.h.b16 %v60
  %v606 = vunpack.c.l.b16 %v61
  %v607 = vunpack.c.h.b16 %v61
  %v608 = vunpack.c.l.b16 %v62
  %v609 = vunpack.c.h.b16 %v62
  %v610 = vunpack.c.l.b16 %v63
  %v611 = vunpack.c.h.b16 %v63
  %v612 = vunpack.c.l.b16 %v64
  %v613 = vunpack.c.h.b16 %v64
  %v614 = vunpack.c.l.b16 %v65
  %v615 = vunpack.c.h.b16 %v65
  %v616 = vunpack.c.l.b16 %v66
  %v617 = vunpack.c.h.b16 %v66
  %v618 = vunpack.c.l.b16 %v67
  %v619 = vunpack.c.h.b16 %v67
  %v620 = vunpack.c.l.b16 %v68
  %v621 = vunpack.c.h.b16 %v68
  %v622 = vunpack.c.l.b16 %v69
  %v623 = vunpack.c.h.b16 %v69
  %v624 = vunpack.c.l.b16 %v70
  %v625 = vunpack.c.h.b16 %v70
  %v626 = vunpack.c.l.b16 %v71
  %v627 = vunpack.c.h.b16 %v71
  %v628 = vunpack.c.l.b16 %v72
  %v629 = vunpack.c.h.b16 %v72
  %v630 = vunpack.c.l.b16 %v73
  %v631 = vunpack.c.h.b16 %v73
  %v632 = vunpack.c.l.b16 %v74
  %v633 = vunpack.c.h.b16 %v74
  %v634 = vunpack.c.l.b16 %v75
  %v635 = vunpack.c.h.b16 %v75
  %v636 = vunpack.c.l.b16 %v76
  %v637 = vunpack.c.h.b16 %v76
  %v638 = vunpack.c.l.b16 %v77
  %v639 = vunpack.c.h.b16 %v77
  %v640 = vunpack.c.l.b16 %v78
  %v641 = vunpack.c.h.b16 %v78
  %v642 = vunpack.c.l.b16 %v79
  %v643 = vunpack.c.h.b16 %v79
  %v644 = vunpack.c.l.b16 %v80
  %v645 = vunpack.c.h.b16 %v80
  %v646 = vunpack.c.l.b16 %v81
  %v647 = vunpack.c.h.b16 %v81
  %v648 = vunpack.c.l.b16 %v82
  %v649 = vunpack.c.h.b16 %v82
  %v650 = vunpack.c.l.b16 %v83
  %v651 = vunpack.c.h.b16 %v83
  %v652 = vunpack.c.l.b16 %v84
  %v653 = vunpack.c.h.b16 %v84
  %v654 = vunpack.c.l.b16 %v85
  %v655 = vunpack.c.h.b16 %v85
  %v656 = vunpack.c.l.b16 %v86
  %v657 = vunpack.c.h.b16 %v86
  %v658 = vunpack.c.l.b16 %v87
  %v659 = vunpack.c.h.b16 %v87
  %v660 = vunpack.c.l.b16 %v88
  %v661 = vunpack.c.h.b16 %v88
  %v662 = vunpack.c.l.b16 %v89
  %v663 = vunpack.c.h.b16 %v89
  %v664 = vunpack.c.l.b16 %v90
  %v665 = vunpack.c.h.b16 %v90
  %v666 = vunpack.c.l.b16 %v91
  %v667 = vunpack.c.h.b16 %v91
  %v668 = vunpack.c.l.b16 %v92
  %v669 = vunpack.c.h.b16 %v92
  %v670 = vunpack.c.l.b16 %v93
  %v671 = vunpack.c.h.b16 %v93
  %v672 = vunpack.c.l.b16 %v94
  %v673 = vunpack.c.h.b16 %v94
  %v674 = vunpack.c.l.b16 %v95
  %v675 = vunpack.c.h.b16 %v95
  %v676 = vunpack.c.l.b16 %v96
  %v677 = vunpack.c.h.b16 %v96
  %v678 = vunpack.c.l.b16 %v97
  %v679 = vunpack.c.h.b16 %v97
  %v680 = vunpack.c.l.b16 %v98
  %v681 = vunpack.c.h.b16 %v98
  %v682 = vunpack.c.l.b16 %v99
  %v683 = vunpack.c.h.b16 %v99
  %v684 = vunpack.c.l.b16 %v100
  %v685 = vunpack.c.h.b16 %v100
  %v686 = vunpack.c.l.b16 %v101
  %v687 = vunpack.c.h.b16 %v101
  %v688 = vunpack.c.l.b16 %v102
  %v689 = vunpack.c.h.b16 %v102
  %v690 = vunpack.c.l.b16 %v103
  %v691 = vunpack.c.h.b16 %v103
  %v692 = vunpack.c.l.b16 %v104
  %v693 = vunpack.c.h.b16 %v104
  %v694 = vunpack.c.l.b16 %v105
  %v695 = vunpack.c.h.b16 %v105
  %v696 = vunpack.c.l.b16 %v106
  %v697 = vunpack.c.h.b16 %v106
  %v698 = vunpack.c.l.b16 %v107
  %v699 = vunpack.c.h.b16 %v107
  %v700 = vunpack.c.l.b16 %v108
  %v701 = vunpack.c.h.b16 %v108
  %v702 = vunpack.c.l.b16 %v109
  %v703 = vunpack.c.h.b16 %v109
  %v704 = vunpack.c.l.b16 %v110
  %v705 = vunpack.c.h.b16 %v110
  %v706 = vunpack.c.l.b16 %v111
  %v707 = vunpack.c.h.b16 %v111
  %v708 = vunpack.c.l.b16 %v112
  %v709 = vunpack.c.h.b16 %v112
  %v710 = vunpack.c.l.b16 %v113
  %v711 = vunpack.c.h.b16 %v113
  %v712 = vunpack.c.l.b16 %v114
  %v713 = vunpack.c.h.b16 %v114
  %v714 = vunpack.c.l.b16 %v115
  %v715 = vunpack.c.h.b16 %v115
  %v716 = vunpack.c.l.b16 %v116
  %v717 = vunpack.c.h.b16 %v116
  %v718 = vunpack.c.l.b16 %v117
  %v719 = vunpack.c.h.b16 %v117
  %v720 = vunpack.c.l.b16 %v118
  %v721 = vunpack.c.h.b16 %v118
  %v722 = vunpack.c.l.b16 %v119
  %v723 = vunpack.c.h.b16 %v119
  %v724 = vunpack.c.l.b16 %v120
  %v725 = vunpack.c.h.b16 %v120
  %v726 = vunpack.c.l.b16 %v121
  %v727 = vunpack.c.h.b16 %v121
  %v728 = vunpack.c.l.b16 %v122
  %v729 = vunpack.c.h.b16 %v122
  %v730 = vunpack.c.l.b16 %v123
  %v731 = vunpack.c.h.b16 %v123
  %v732 = vunpack.c.l.b16 %v124
  %v733 = vunpack.c.h.b16 %v124
  %v734 = vunpack.c.l.b16 %v125
  %v735 = vunpack.c.h.b16 %v125
  %v736 = vunpack.c.l.b16 %v126
  %v737 = vunpack.c.h.b16 %v126
  %v738 = vunpack.c.l.b16 %v127
  %v739 = vunpack.c.h.b16 %v127
  %v740 = vunpack.c.l.b16 %v128
  %v741 = vunpack.c.h.b16 %v128
  %v742 = vunpack.c.l.b16 %v129
  %v743 = vunpack.c.h.b16 %v129
  %v744 = vunpack.c.l.b16 %v130
  %v745 = vunpack.c.h.b16 %v130
  %v746 = vunpack.c.l.b16 %v131
  %v747 = vunpack.c.h.b16 %v131
  %v748 = vunpack.c.l.b16 %v132
  %v749 = vunpack.c.h.b16 %v132
  %v750 = vunpack.c.l.b16 %v133
  %v751 = vunpack.c.h.b16 %v133
  %v752 = vunpack.c.l.b16 %v134
  %v753 = vunpack.c.h.b16 %v134
  %v754 = vunpack.c.l.b16 %v135
  %v755 = vunpack.c.h.b16 %v135
  %v756 = vunpack.c.l.b16 %v136
  %v757 = vunpack.c.h.b16 %v136
  %v758 = vunpack.c.l.b16 %v137
  %v759 = vunpack.c.h.b16 %v137
  %v760 = vunpack.c.l.b16 %v138
  %v761 = vunpack.c.h.b16 %v138
  %v762 = vunpack.c.l.b16 %v139
  %v763 = vunpack.c.h.b16 %v139
  %v764 = vunpack.c.l.b16 %v140
  %v765 = vunpack.c.h.b16 %v140
  %v766 = vunpack.c.l.b16 %v141
  %v767 = vunpack.c.h.b16 %v141
  %v768 = vunpack.c.l.b16 %v142
  %v769 = vunpack.c.h.b16 %v142
  %v770 = vunpack.c.l.b16 %v143
  %v771 = vunpack.c.h.b16 %v143
  %v772 = vunpack.c.l.b16 %v144
  %v773 = vunpack.c.h.b16 %v144
  %v774 = vunpack.c.l.b16 %v145
  %v775 = vunpack.c.h.b16 %v145
  %v776 = vunpack.c.l.b16 %v146
  %v777 = vunpack.c.h.b16 %v146
  %v778 = vunpack.c.l.b16 %v147
  %v779 = vunpack.c.h.b16 %v147
  %v780 = vunpack.c.l.b16 %v148
  %v781 = vunpack.c.h.b16 %v148
  %v782 = vunpack.c.l.b16 %v149
  %v783 = vunpack.c.h.b16 %v149
  %v784 = vunpack.c.l.b16 %v150
  %v785 = vunpack.c.h.b16 %v150
  %v786 = vunpack.c.l.b16 %v151
  %v787 = vunpack.c.h.b16 %v151
  %v788 = vunpack.c.l.b16 %v152
  %v789 = vunpack.c.h.b16 %v152
  %v790 = vunpack.c.l.b16 %v153
  %v791 = vunpack.c.h.b16 %v153
  %v792 = vunpack.c.l.b16 %v154
  %v793 = vunpack.c.h.b16 %v154
  %v794 = vunpack.c.l.b16 %v155
  %v795 = vunpack.c.h.b16 %v155
  %v796 = vunpack.c.l.b16 %v156
  %v797 = vunpack.c.h.b16 %v156
  %v798 = vunpack.c.l.b16 %v157
  %v799 = vunpack.c.h.b16 %v157
  %v800 = vunpack.c.l.b16 %v158
  %v801 = vunpack.c.h.b16 %v158
  %v802 = vunpack.c.l.b16 %v159
  %v803 = vunpack.c.h.b16 %v159
  %v804 = vunpack.c.l.b16 %v160
  %v805 = vunpack.c.h.b16 %v160
  %v806 = vunpack.c.l.b16 %v161
  %v807 = vunpack.c.h.b16 %v161
  %v808 = vunpack.c.l.b16 %v162
  %v809 = vunpack.c.h.b16 %v162
  %v810 = vunpack.c.l.b16 %v163
  %v811 = vunpack.c.h.b16 %v163
  %v812 = vunpack.c.l.b16 %v164
  %v813 = vunpack.c.h.b16 %v164
  %v814 = vunpack.c.l.b16 %v165
  %v815 = vunpack.c.h.b16 %v165
  %v816 = vunpack.c.l.b16 %v166
  %v817 = vunpack.c.h.b16 %v166
  %v818 = vunpack.c.l.b16 %v167
  %v819 = vunpack.c.h.b16 %v167
  %v820 = vunpack.c.l.b16 %v168
  %v821 = vunpack.c.h.b16 %v168
  %v822 = vunpack.c.l.b16 %v169
  %v823 = vunpack.c.h.b16 %v169
  %v824 = vunpack.c.l.b16 %v170
  %v825 = vunpack.c.h.b16 %v170
  %v826 = vunpack.c.l.b16 %v171
  %v827 = vunpack.c.h.b16 %v171
  %v828 = vunpack.c.l.b16 %v172
  %v829 = vunpack.c.h.b16 %v172
  %v830 = vunpack.c.l.b16 %v173
  %v831 = vunpack.c.h.b16 %v173
  %v832 = vunpack.c.l.b16 %v174
  %v833 = vunpack.c.h.b16 %v174
  %v834 = vunpack.c.l.b16 %v175
  %v835 = vunpack.c.h.b16 %v175
  %v836 = vunpack.c.l.b16 %v176
  %v837 = vunpack.c.h.b16 %v176
  %v838 = vunpack.c.l.b16 %v177
  %v839 = vunpack.c.h.b16 %v177
  %v840 = vunpack.c.l.b16 %v178
  %v841 = vunpack.c.h.b16 %v178
  %v842 = vunpack.c.l.b16 %v179
  %v843 = vunpack.c.h.b16 %v179
  %v844 = vunpack.c.l.b16 %v180
  %v845 = vunpack.c.h.b16 %v180
  %v846 = vunpack.c.l.b16 %v181
  %v847 = vunpack.c.h.b16 %v181
  %v848 = vunpack.c.l.b16 %v182
  %v849 = vunpack.c.h.b16 %v182
  %v850 = vunpack.c.l.b16 %v183
  %v851 = vunpack.c.h.b16 %v183
  %v852 = vunpack.c.l.b16 %v184
  %v853 = vunpack.c.h.b16 %v184
  %v854 = vunpack.c.l.b16 %v185
  %v855 = vunpack.c.h.b16 %v185
  %v856 = vunpack.c.l.b16 %v186
  %v857 = vunpack.c.h.b16 %v186
  %v858 = vunpack.c.l.b16 %v187
  %v859 = vunpack.c.h.b16 %v187
  %v860 = vunpack.c.l.b16 %v188
  %v861 = vunpack.c.h.b16 %v188
  %v862 = vunpack.c.l.b16 %v189
  %v863 = vunpack.c.h.b16 %v189
  %v864 = vunpack.c.l.b16 %v190
  %v865 = vunpack.c.h.b16 %v190
  %v866 = vunpack.c.l.b16 %v191
  %v867 = vunpack.c.h.b16 %v191
  %v868 = vunpack.c.l.b16 %v192
  %v869 = vunpack.c.h.b16 %v192
  %v870 = vunpack.c.l.b16 %v193
  %v871 = vunpack.c.h.b16 %v193
  %v872 = vunpack.c.l.b16 %v194
  %v873 = vunpack.c.h.b16 %v194
  %v874 = vunpack.c.l.b16 %v195
  %v875 = vunpack.c.h.b16 %v195
  %v876 = vunpack.c.l.b16 %v196
  %v877 = vunpack.c.h.b16 %v196
  %v878 = vunpack.c.l.b16 %v197
  %v879 = vunpack.c.h.b16 %v197
  %v880 = vunpack.c.l.b16 %v198
  %v881 = vunpack.c.h.b16 %v198
  %v882 = vunpack.c.l.b16 %v199
  %v883 = vunpack.c.h.b16 %v199
  %v884 = vunpack.c.l.b16 %v200
  %v885 = vunpack.c.h.b16 %v200
  %v886 = vunpack.c.l.b16 %v201
  %v887 = vunpack.c.h.b16 %v201
  %v888 = vunpack.c.l.b16 %v202
  %v889 = vunpack.c.h.b16 %v202
  %v890 = vunpack.c.l.b16 %v203
  %v891 = vunpack.c.h.b16 %v203
  %v892 = vunpack.c.l.b16 %v204
  %v893 = vunpack.c.h.b16 %v204
  %v894 = vunpack.c.l.b16 %v205
  %v895 = vunpack.c.h.b16 %v205
  %v896 = vunpack.c.l.b16 %v206
  %v897 = vunpack.c.h.b16 %v206
  %v898 = vunpack.c.l.b16 %v207
  %v899 = vunpack.c.h.b16 %v207
  %v900 = vunpack.c.l.b16 %v208
  %v901 = vunpack.c.h.b16 %v208
  %v902 = vunpack.c.l.b16 %v209
  %v903 = vunpack.c.h.b16 %v209
  %v904 = vunpack.c.l.b16 %v210
  %v905 = vunpack.c.h.b16 %v210
  %v906 = vunpack.c.l.b16 %v211
  %v907 = vunpack.c.h.b16 %v211
  %v908 = vunpack.c.l.b16 %v212
  %v909 = vunpack.c.h.b16 %v212
  %v910 = vunpack.c.l.b16 %v213
  %v911 = vunpack.c.h.b16 %v213
  %v912 = vunpack.c.l.b16 %v214
  %v913 = vunpack.c.h.b16 %v214
  %v914 = vunpack.c.l.b16 %v215
  %v915 = vunpack.c.h.b16 %v215
  %v916 = vunpack.c.l.b16 %v216
  %v917 = vunpack.c.h.b16 %v216
  %v918 = vunpack.c.l.b16 %v217
  %v919 = vunpack.c.h.b16 %v217
  %v920 = vunpack.c.l.b16 %v218
  %v921 = vunpack.c.h.b16 %v218
  %v922 = vunpack.c.l.b16 %v219
  %v923 = vunpack.c.h.b16 %v219
  %v924 = vunpack.c.l.b16 %v220
  %v925 = vunpack.c.h.b16 %v220
  %v926 = vunpack.c.l.b16 %v221
  %v927 = vunpack.c.h.b16 %v221
  %v928 = vunpack.c.l.b16 %v222
  %v929 = vunpack.c.h.b16 %v222
  %v930 = vunpack.c.l.b16 %v223
  %v931 = vunpack.c.h.b16 %v223
  %v932 = vunpack.c.l.b16 %v224
  %v933 = vunpack.c.h.b16 %v224
  %v934 = vunpack.c.l.b16 %v225
  %v935 = vunpack.c.h.b16 %v225
  %v936 = vunpack.c.l.b16 %v226
  %v937 = vunpack.c.h.b16 %v226
  %v938 = vunpack.c.l.b16 %v227
  %v939 = vunpack.c.h.b16 %v227
  %v940 = vunpack.c.l.b16 %v228
  %v941 = vunpack.c.h.b16 %v228
  %v942 = vunpack.c.l.b16 %v229
  %v943 = vunpack.c.h.b16 %v229
  %v944 = vunpack.c.l.b16 %v230
  %v945 = vunpack.c.h.b16 %v230
  %v946 = vunpack.c.l.b16 %v231
  %v947 = vunpack.c.h.b16 %v231
  %v948 = vunpack.c.l.b16 %v232
  %v949 = vunpack.c.h.b16 %v232
  %v950 = vunpack.c.l.b16 %v233
  %v951 = vunpack.c.h.b16 %v233
  %v952 = vunpack.c.l.b16 %v234
  %v953 = vunpack.c.h.b16 %v234
  %v954 = vunpack.c.l.b16 %v235
  %v955 = vunpack.c.h.b16 %v235
  %v956 = vunpack.c.l.b16 %v236
  %v957 = vunpack.c.h.b16 %v236
  %v958 = vunpack.c.l.b16 %v237
  %v959 = vunpack.c.h.b16 %v237
  %v960 = vunpack.c.l.b16 %v238
  %v961 = vunpack.c.h.b16 %v238
  %v962 = vunpack.c.l.b16 %v239
  %v963 = vunpack.c.h.b16 %v239
  %v964 = vunpack.c.l.b16 %v240
  %v965 = vunpack.c.h.b16 %v240
  %v966 = vunpack.c.l.b16 %v241
  %v967 = vunpack.c.h.b16 %v241
  %v968 = vunpack.c.l.b16 %v242
  %v969 = vunpack.c.h.b16 %v242
  %v970 = vunpack.c.l.b16 %v243
  %v971 = vunpack.c.h.b16 %v243
  %v972 = vunpack.c.l.b16 %v244
  %v973 = vunpack.c.h.b16 %v244
  %v974 = vunpack.c.l.b16 %v245
  %v975 = vunpack.c.h.b16 %v245
  %v976 = vunpack.c.l.b16 %v246
  %v977 = vunpack.c.h.b16 %v246
  %v978 = vunpack.c.l.b16 %v247
  %v979 = vunpack.c.h.b16 %v247
  %v980 = vpack.c.b16 %v582, %v580
  %v981 = vpack.c.b16 %v583, %v581
  %v982 = vpack.c.b16 %v586, %v584
  %v983 = vpack.c.b16 %v587, %v585
  %v984 = vpack.c.b16 %v590, %v588
  %v985 = vpack.c.b16 %v591, %v589
  %v986 = vpack.c.b16 %v594, %v592
  %v987 = vpack.c.b16 %v595, %v593
  %v988 = vpack.c.b16 %v598, %v596
  %v989 = vpack.c.b16 %v599, %v597
  %v990 = vpack.c.b16 %v602, %v600
  %v991 = vpack.c.b16 %v603, %v601
  %v992 = vpack.c.b16 %v606, %v604
  %v993 = vpack.c.b16 %v607, %v605
  %v994 = vpack.c.b16 %v610, %v608
  %v995 = vpack.c.b16 %v611, %v609
  %v996 = vpack.c.b16 %v614, %v612
  %v997 = vpack.c.b16 %v615, %v613
  %v998 = vpack.c.b16 %v618, %v616
  %v999 = vpack.c.b16 %v619, %v617
  %v1000 = vpack.c.b16 %v622, %v620
  %v1001 = vpack.c.b16 %v623, %v621
  %v1002 = vpack.c.b16 %v626, %v624
  %v1003 = vpack.c.b16 %v627, %v625
  %v1004 = vpack.c.b16 %v630, %v628
  %v1005 = vpack.c.b16 %v631, %v629
  %v1006 = vpack.c.b16 %v634, %v632
  %v1007 = vpack.c.b16 %v635, %v633
  %v1008 = vpack.c.b16 %v638, %v636
  %v1009 = vpack.c.b16 %v639, %v637
  %v1010 = vpack.c.b16 %v642, %v640
  %v1011 = vpack.c.b16 %v643, %v641
  %v1012 = vpack.c.b16 %v646, %v644
  %v1013 = vpack.c.b16 %v647, %v645
  %v1014 = vpack.c.b16 %v650, %v648
  %v1015 = vpack.c.b16 %v651, %v649
  %v1016 = vpack.c.b16 %v654, %v652
  %v1017 = vpack.c.b16 %v655, %v653
  %v1018 = vpack.c.b16 %v658, %v656
  %v1019 = vpack.c.b16 %v659, %v657
  %v1020 = vpack.c.b16 %v662, %v660
  %v1021 = vpack.c.b16 %v663, %v661
  %v1022 = vpack.c.b16 %v666, %v664
  %v1023 = vpack.c.b16 %v667, %v665
  %v1024 = vpack.c.b16 %v670, %v668
  %v1025 = vpack.c.b16 %v671, %v669
  %v1026 = vpack.c.b16 %v674, %v672
  %v1027 = vpack.c.b16 %v675, %v673
  %v1028 = vpack.c.b16 %v678, %v676
  %v1029 = vpack.c.b16 %v679, %v677
  %v1030 = vpack.c.b16 %v682, %v680
  %v1031 = vpack.c.b16 %v683, %v681
  %v1032 = vpack.c.b16 %v686, %v684
  %v1033 = vpack.c.b16 %v687, %v685
  %v1034 = vpack.c.b16 %v690, %v688
  %v1035 = vpack.c.b16 %v691, %v689
  %v1036 = vpack.c.b16 %v694, %v692
  %v1037 = vpack.c.b16 %v695, %v693
  %v1038 = vpack.c.b16 %v698, %v696
  %v1039 = vpack.c.b16 %v699, %v697
  %v1040 = vpack.c.b16 %v702, %v700
  %v1041 = vpack.c.b16 %v703, %v701
  %v1042 = vpack.c.b16 %v706, %v704
  %v1043 = vpack.c.b16 %v707, %v705
  %v1044 = vpack.c.b16 %v710, %v708
  %v1045 = vpack.c.b16 %v711, %v709
  %v1046 = vpack.c.b16 %v714, %v712
  %v1047 = vpack.c.b16 %v715, %v713
  %v1048 = vpack.c.b16 %v718, %v716
  %v1049 = vpack.c.b16 %v719, %v717
  %v1050 = vpack.c.b16 %v722, %v720
  %v1051 = vpack.c.b16 %v723, %v721
  %v1052 = vpack.c.b16 %v726, %v724
  %v1053 = vpack.c.b16 %v727, %v725
  %v1054 = vpack.c.b16 %v730, %v728
  %v1055 = vpack.c.b16 %v731, %v729
  %v1056 = vpack.c.b16 %v734, %v732
  %v1057 = vpack.c.b16 %v735, %v733
  %v1058 = vpack.c.b16 %v738, %v736
  %v1059 = vpack.c.b16 %v739, %v737
  %v1060 = vpack.c.b16 %v742, %v740
  %v1061 = vpack.c.b16 %v743, %v741
  %v1062 = vpack.c.b16 %v746, %v744
  %v1063 = vpack.c.b16 %v747, %v745
  %v1064 = vpack.c.b16 %v750, %v748
  %v1065 = vpack.c.b16 %v751, %v749
  %v1066 = vpack.c.b16 %v754, %v752
  %v1067 = vpack.c.b16 %v755, %v753
  %v1068 = vpack.c.b16 %v758, %v756
  %v1069 = vpack.c.b16 %v759, %v757
  %v1070 = vpack.c.b16 %v762, %v760
  %v1071 = vpack.c.b16 %v763, %v761
  %v1072 = vpack.c.b16 %v766, %v764
  %v1073 = vpack.c.b16 %v767, %v765
  %v1074 = vpack.c.b16 %v770, %v768
  %v1075 = vpack.c.b16 %v771, %v769
  %v1076 = vpack.c.b16 %v774, %v772
  %v1077 = vpack.c.b16 %v775, %v773
  %v1078 = vpack.c.b16 %v778, %v776
  %v1079 = vpack.c.b16 %v779, %v777
  %v1080 = vpack.c.b16 %v782, %v780
  %v1081 = vpack.c.b16 %v783, %v781
  %v1082 = vpack.c.b16 %v786, %v784
  %v1083 = vpack.c.b16 %v787, %v785
  %v1084 = vpack.c.b16 %v790, %v788
  %v1085 = vpack.c.b16 %v791, %v789
  %v1086 = vpack.c.b16 %v794, %v792
  %v1087 = vpack.c.b16 %v795, %v793
  %v1088 = vpack.c.b16 %v798, %v796
  %v1089 = vpack.c.b16 %v799, %v797
  %v1090 = vpack.c.b16 %v802, %v800
  %v1091 = vpack.c.b16 %v803, %v801
  %v1092 = vpack.c.b16 %v806, %v804
  %v1093 = vpack.c.b16 %v807, %v805
  %v1094 = vpack.c.b16 %v810, %v808
  %v1095 = vpack.c.b16 %v811, %v809
  %v1096 = vpack.c.b16 %v814, %v812
  %v1097 = vpack.c.b16 %v815, %v813
  %v1098 = vpack.c.b16 %v818, %v816
  %v1099 = vpack.c.b16 %v819, %v817
  %v1100 = vpack.c.b16 %v822, %v820
  %v1101 = vpack.c.b16 %v823, %v821
  %v1102 = vpack.c.b16 %v826, %v824
  %v1103 = vpack.c.b16 %v827, %v825
  %v1104 = vpack.c.b16 %v830, %v828
  %v1105 = vpack.c.b16 %v831, %v829
  %v1106 = vpack.c.b16 %v834, %v832
  %v1107 = vpack.c.b16 %v835, %v833
  %v1108 = vpack.c.b16 %v838, %v836
  %v1109 = vpack.c.b16 %v839, %v837
  %v1110 = vpack.c.b16 %v842, %v840
  %v1111 = vpack.c.b16 %v843, %v841
  %v1112 = vpack.c.b16 %v846, %v844
  %v1113 = vpack.c.b16 %v847, %v845
  %v1114 = vpack.c.b16 %v850, %v848
  %v1115 = vpack.c.b16 %v851, %v849
  %v1116 = vpack.c.b16 %v854, %v852
  %v1117 = vpack.c.b16 %v855, %v853
  %v1118 = vpack.c.b16 %v858, %v856
  %v1119 = vpack.c.b16 %v859, %v857
  %v1120 = vpack.c.b16 %v862, %v860
  %v1121 = vpack.c.b16 %v863, %v861
  %v1122 = vpack.c.b16 %v866, %v864
  %v1123 = vpack.c.b16 %v867, %v865
  %v1124 = vpack.c.b16 %v870, %v868
  %v1125 = vpack.c.b16 %v871, %v869
  %v1126 = vpack.c.b16 %v874, %v872
  %v1127 = vpack.c.b16 %v875, %v873
  %v1128 = vpack.c.b16 %v878, %v876
  %v1129 = vpack.c.b16 %v879, %v877
  %v1130 = vpack.c.b16 %v882, %v880
  %v1131 = vpack.c.b16 %v883, %v881
  %v1132 = vpack.c.b16 %v886, %v884
  %v1133 = vpack.c.b16 %v887, %v885
  %v1134 = vpack.c.b16 %v890, %v888
  %v1135 = vpack.c.b16 %v891, %v889
  %v1136 = vpack.c.b16 %v894, %v892
  %v1137 = vpack.c.b16 %v895, %v893
  %v1138 = vpack.c.b16 %v898, %v896
  %v1139 = vpack.c.b16 %v899, %v897
  %v1140 = vpack.c.b16 %v902, %v900
  %v1141 = vpack.c.b16 %v903, %v901
  %v1142 = vpack.c.b16 %v906, %v904
  %v1143 = vpack.c.b16 %v907, %v905
  %v1144 = vpack.c.b16 %v910, %v908
  %v1145 = vpack.c.b16 %v911, %v909
  %v1146 = vpack.c.b16 %v914, %v912
  %v1147 = vpack.c.b16 %v915, %v913
  %v1148 = vpack.c.b16 %v918, %v916
  %v1149 = vpack.c.b16 %v919, %v917
  %v1150 = vpack.c.b16 %v922, %v920
  %v1151 = vpack.c.b16 %v923, %v921
  %v1152 = vpack.c.b16 %v926, %v924
  %v1153 = vpack.c.b16 %v927, %v925
  %v1154 = vpack.c.b16 %v930, %v928
  %v1155 = vpack.c.b16 %v931, %v929
  %v1156 = vpack.c.b16 %v934, %v932
  %v1157 = vpack.c.b16 %v935, %v933
  %v1158 = vpack.c.b16 %v938, %v936
  %v1159 = vpack.c.b16 %v939, %v937
  %v1160 = vpack.c.b16 %v942, %v940
  %v1161 = vpack.c.b16 %v943, %v941
  %v1162 = vpack.c.b16 %v946, %v944
  %v1163 = vpack.c.b16 %v947, %v945
  %v1164 = vpack.c.b16 %v950, %v948
  %v1165 = vpack.c.b16 %v951, %v949
  %v1166 = vpack.c.b16 %v954, %v952
  %v1167 = vpack.c.b16 %v955, %v953
  %v1168 = vpack.c.b16 %v958, %v956
  %v1169 = vpack.c.b16 %v959, %v957
  %v1170 = vpack.c.b16 %v962, %v960
  %v1171 = vpack.c.b16 %v963, %v961
  %v1172 = vpack.c.b16 %v966, %v964
  %v1173 = vpack.c.b16 %v967, %v965
  %v1174 = vpack.c.b16 %v970, %v968
  %v1175 = vpack.c.b16 %v971, %v969
  %v1176 = vpack.c.b16 %v974, %v972
  %v1177 = vpack.c.b16 %v975, %v973
  %v1178 = vpack.c.b16 %v978, %v976
  %v1179 = vpack.c.b16 %v979, %v977
  %vm1380 = vcmask 523264
  %v1382 = vsel %vm1380, %v342, 0
  %v1385 = vsel %vm1380, %v355, 0
  %1387 = vmatpush.bf16.msra.mxu0 %v994
  %1388 = vmatpush.bf16.msra.mxu0 %v992
  %1389 = vmatpush.bf16.msra.mxu0 %v990
  %1390 = vmatpush.bf16.msra.mxu0 %v988
  %1391 = vmatpush.bf16.msra.mxu0 %v986
  %1392 = vmatpush.bf16.msra.mxu0 %v984
  %1393 = vmatpush.bf16.msra.mxu0 %v982
  %1394 = vmatpush.bf16.msra.mxu0 %v980
  %1395 = vmatmul.bf16.gmra.mxu0 %v330
  %v1396 = vpop.f32.mrf.mxu0
  %v1397 = vadd.f32 %v248, %v1396
  %v1398 = vpop.f32.mrf.mxu0
  %v1399 = vadd.f32 %v248, %v1398
  %1400 = vmatmul.bf16.gmra.mxu0 %v343
  %v1401 = vpop.f32.mrf.mxu0
  %v1402 = vadd.f32 %v248, %v1401
  %v1403 = vpop.f32.mrf.mxu0
  %v1404 = vadd.f32 %v248, %v1403
  %1405 = vdwg.mxu0
  %1406 = vmatpush.bf16.msra.mxu0 %v1010
  %1407 = vmatpush.bf16.msra.mxu0 %v1008
  %1408 = vmatpush.bf16.msra.mxu0 %v1006
  %1409 = vmatpush.bf16.msra.mxu0 %v1004
  %1410 = vmatpush.bf16.msra.mxu0 %v1002
  %1411 = vmatpush.bf16.msra.mxu0 %v1000
  %1412 = vmatpush.bf16.msra.mxu0 %v998
  %1413 = vmatpush.bf16.msra.mxu0 %v996
  %1414 = vmatmul.bf16.gmra.mxu0 %v331
  %v1415 = vpop.f32.mrf.mxu0
  %v1416 = vadd.f32 %v1397, %v1415
  %v1417 = vpop.f32.mrf.mxu0
  %v1418 = vadd.f32 %v1399, %v1417
  %1419 = vmatmul.bf16.gmra.mxu0 %v344
  %v1420 = vpop.f32.mrf.mxu0
  %v1421 = vadd.f32 %v1402, %v1420
  %v1422 = vpop.f32.mrf.mxu0
  %v1423 = vadd.f32 %v1404, %v1422
  %1424 = vdwg.mxu0
  %1425 = vmatpush.bf16.msra.mxu0 %v1026
  %1426 = vmatpush.bf16.msra.mxu0 %v1024
  %1427 = vmatpush.bf16.msra.mxu0 %v1022
  %1428 = vmatpush.bf16.msra.mxu0 %v1020
  %1429 = vmatpush.bf16.msra.mxu0 %v1018
  %1430 = vmatpush.bf16.msra.mxu0 %v1016
  %1431 = vmatpush.bf16.msra.mxu0 %v1014
  %1432 = vmatpush.bf16.msra.mxu0 %v1012
  %1433 = vmatmul.bf16.gmra.mxu0 %v332
  %v1434 = vpop.f32.mrf.mxu0
  %v1435 = vadd.f32 %v1416, %v1434
  %v1436 = vpop.f32.mrf.mxu0
  %v1437 = vadd.f32 %v1418, %v1436
  %1438 = vmatmul.bf16.gmra.mxu0 %v345
  %v1439 = vpop.f32.mrf.mxu0
  %v1440 = vadd.f32 %v1421, %v1439
  %v1441 = vpop.f32.mrf.mxu0
  %v1442 = vadd.f32 %v1423, %v1441
  %1443 = vdwg.mxu0
  %1444 = vmatpush.bf16.msra.mxu0 %v1042
  %1445 = vmatpush.bf16.msra.mxu0 %v1040
  %1446 = vmatpush.bf16.msra.mxu0 %v1038
  %1447 = vmatpush.bf16.msra.mxu0 %v1036
  %1448 = vmatpush.bf16.msra.mxu0 %v1034
  %1449 = vmatpush.bf16.msra.mxu0 %v1032
  %1450 = vmatpush.bf16.msra.mxu0 %v1030
  %1451 = vmatpush.bf16.msra.mxu0 %v1028
  %1452 = vmatmul.bf16.gmra.mxu0 %v333
  %v1453 = vpop.f32.mrf.mxu0
  %v1454 = vadd.f32 %v1435, %v1453
  %v1455 = vpop.f32.mrf.mxu0
  %v1456 = vadd.f32 %v1437, %v1455
  %1457 = vmatmul.bf16.gmra.mxu0 %v346
  %v1458 = vpop.f32.mrf.mxu0
  %v1459 = vadd.f32 %v1440, %v1458
  %v1460 = vpop.f32.mrf.mxu0
  %v1461 = vadd.f32 %v1442, %v1460
  %1462 = vdwg.mxu0
  %1463 = vmatpush.bf16.msra.mxu0 %v1058
  %1464 = vmatpush.bf16.msra.mxu0 %v1056
  %1465 = vmatpush.bf16.msra.mxu0 %v1054
  %1466 = vmatpush.bf16.msra.mxu0 %v1052
  %1467 = vmatpush.bf16.msra.mxu0 %v1050
  %1468 = vmatpush.bf16.msra.mxu0 %v1048
  %1469 = vmatpush.bf16.msra.mxu0 %v1046
  %1470 = vmatpush.bf16.msra.mxu0 %v1044
  %1471 = vmatmul.bf16.gmra.mxu0 %v334
  %v1472 = vpop.f32.mrf.mxu0
  %v1473 = vadd.f32 %v1454, %v1472
  %v1474 = vpop.f32.mrf.mxu0
  %v1475 = vadd.f32 %v1456, %v1474
  %1476 = vmatmul.bf16.gmra.mxu0 %v347
  %v1477 = vpop.f32.mrf.mxu0
  %v1478 = vadd.f32 %v1459, %v1477
  %v1479 = vpop.f32.mrf.mxu0
  %v1480 = vadd.f32 %v1461, %v1479
  %1481 = vdwg.mxu0
  %1482 = vmatpush.bf16.msra.mxu0 %v1074
  %1483 = vmatpush.bf16.msra.mxu0 %v1072
  %1484 = vmatpush.bf16.msra.mxu0 %v1070
  %1485 = vmatpush.bf16.msra.mxu0 %v1068
  %1486 = vmatpush.bf16.msra.mxu0 %v1066
  %1487 = vmatpush.bf16.msra.mxu0 %v1064
  %1488 = vmatpush.bf16.msra.mxu0 %v1062
  %1489 = vmatpush.bf16.msra.mxu0 %v1060
  %1490 = vmatmul.bf16.gmra.mxu0 %v335
  %v1491 = vpop.f32.mrf.mxu0
  %v1492 = vadd.f32 %v1473, %v1491
  %v1493 = vpop.f32.mrf.mxu0
  %v1494 = vadd.f32 %v1475, %v1493
  %1495 = vmatmul.bf16.gmra.mxu0 %v348
  %v1496 = vpop.f32.mrf.mxu0
  %v1497 = vadd.f32 %v1478, %v1496
  %v1498 = vpop.f32.mrf.mxu0
  %v1499 = vadd.f32 %v1480, %v1498
  %1500 = vdwg.mxu0
  %1501 = vmatpush.bf16.msra.mxu0 %v1090
  %1502 = vmatpush.bf16.msra.mxu0 %v1088
  %1503 = vmatpush.bf16.msra.mxu0 %v1086
  %1504 = vmatpush.bf16.msra.mxu0 %v1084
  %1505 = vmatpush.bf16.msra.mxu0 %v1082
  %1506 = vmatpush.bf16.msra.mxu0 %v1080
  %1507 = vmatpush.bf16.msra.mxu0 %v1078
  %1508 = vmatpush.bf16.msra.mxu0 %v1076
  %1509 = vmatmul.bf16.gmra.mxu0 %v336
  %v1510 = vpop.f32.mrf.mxu0
  %v1511 = vadd.f32 %v1492, %v1510
  %v1512 = vpop.f32.mrf.mxu0
  %v1513 = vadd.f32 %v1494, %v1512
  %1514 = vmatmul.bf16.gmra.mxu0 %v349
  %v1515 = vpop.f32.mrf.mxu0
  %v1516 = vadd.f32 %v1497, %v1515
  %v1517 = vpop.f32.mrf.mxu0
  %v1518 = vadd.f32 %v1499, %v1517
  %1519 = vdwg.mxu0
  %1520 = vmatpush.bf16.msra.mxu0 %v1106
  %1521 = vmatpush.bf16.msra.mxu0 %v1104
  %1522 = vmatpush.bf16.msra.mxu0 %v1102
  %1523 = vmatpush.bf16.msra.mxu0 %v1100
  %1524 = vmatpush.bf16.msra.mxu0 %v1098
  %1525 = vmatpush.bf16.msra.mxu0 %v1096
  %1526 = vmatpush.bf16.msra.mxu0 %v1094
  %1527 = vmatpush.bf16.msra.mxu0 %v1092
  %1528 = vmatmul.bf16.gmra.mxu0 %v337
  %v1529 = vpop.f32.mrf.mxu0
  %v1530 = vadd.f32 %v1511, %v1529
  %v1531 = vpop.f32.mrf.mxu0
  %v1532 = vadd.f32 %v1513, %v1531
  %1533 = vmatmul.bf16.gmra.mxu0 %v350
  %v1534 = vpop.f32.mrf.mxu0
  %v1535 = vadd.f32 %v1516, %v1534
  %v1536 = vpop.f32.mrf.mxu0
  %v1537 = vadd.f32 %v1518, %v1536
  %1538 = vdwg.mxu0
  %1539 = vmatpush.bf16.msra.mxu0 %v1122
  %1540 = vmatpush.bf16.msra.mxu0 %v1120
  %1541 = vmatpush.bf16.msra.mxu0 %v1118
  %1542 = vmatpush.bf16.msra.mxu0 %v1116
  %1543 = vmatpush.bf16.msra.mxu0 %v1114
  %1544 = vmatpush.bf16.msra.mxu0 %v1112
  %1545 = vmatpush.bf16.msra.mxu0 %v1110
  %1546 = vmatpush.bf16.msra.mxu0 %v1108
  %1547 = vmatmul.bf16.gmra.mxu0 %v338
  %v1548 = vpop.f32.mrf.mxu0
  %v1549 = vadd.f32 %v1530, %v1548
  %v1550 = vpop.f32.mrf.mxu0
  %v1551 = vadd.f32 %v1532, %v1550
  %1552 = vmatmul.bf16.gmra.mxu0 %v351
  %v1553 = vpop.f32.mrf.mxu0
  %v1554 = vadd.f32 %v1535, %v1553
  %v1555 = vpop.f32.mrf.mxu0
  %v1556 = vadd.f32 %v1537, %v1555
  %1557 = vdwg.mxu0
  %1558 = vmatpush.bf16.msra.mxu0 %v1138
  %1559 = vmatpush.bf16.msra.mxu0 %v1136
  %1560 = vmatpush.bf16.msra.mxu0 %v1134
  %1561 = vmatpush.bf16.msra.mxu0 %v1132
  %1562 = vmatpush.bf16.msra.mxu0 %v1130
  %1563 = vmatpush.bf16.msra.mxu0 %v1128
  %1564 = vmatpush.bf16.msra.mxu0 %v1126
  %1565 = vmatpush.bf16.msra.mxu0 %v1124
  %1566 = vmatmul.bf16.gmra.mxu0 %v339
  %v1567 = vpop.f32.mrf.mxu0
  %v1568 = vadd.f32 %v1549, %v1567
  %v1569 = vpop.f32.mrf.mxu0
  %v1570 = vadd.f32 %v1551, %v1569
  %1571 = vmatmul.bf16.gmra.mxu0 %v352
  %v1572 = vpop.f32.mrf.mxu0
  %v1573 = vadd.f32 %v1554, %v1572
  %v1574 = vpop.f32.mrf.mxu0
  %v1575 = vadd.f32 %v1556, %v1574
  %1576 = vdwg.mxu0
  %1577 = vmatpush.bf16.msra.mxu0 %v1154
  %1578 = vmatpush.bf16.msra.mxu0 %v1152
  %1579 = vmatpush.bf16.msra.mxu0 %v1150
  %1580 = vmatpush.bf16.msra.mxu0 %v1148
  %1581 = vmatpush.bf16.msra.mxu0 %v1146
  %1582 = vmatpush.bf16.msra.mxu0 %v1144
  %1583 = vmatpush.bf16.msra.mxu0 %v1142
  %1584 = vmatpush.bf16.msra.mxu0 %v1140
  %1585 = vmatmul.bf16.gmra.mxu0 %v340
  %v1586 = vpop.f32.mrf.mxu0
  %v1587 = vadd.f32 %v1568, %v1586
  %v1588 = vpop.f32.mrf.mxu0
  %v1589 = vadd.f32 %v1570, %v1588
  %1590 = vmatmul.bf16.gmra.mxu0 %v353
  %v1591 = vpop.f32.mrf.mxu0
  %v1592 = vadd.f32 %v1573, %v1591
  %v1593 = vpop.f32.mrf.mxu0
  %v1594 = vadd.f32 %v1575, %v1593
  %1595 = vdwg.mxu0
  %1596 = vmatpush.bf16.msra.mxu0 %v1170
  %1597 = vmatpush.bf16.msra.mxu0 %v1168
  %1598 = vmatpush.bf16.msra.mxu0 %v1166
  %1599 = vmatpush.bf16.msra.mxu0 %v1164
  %1600 = vmatpush.bf16.msra.mxu0 %v1162
  %1601 = vmatpush.bf16.msra.mxu0 %v1160
  %1602 = vmatpush.bf16.msra.mxu0 %v1158
  %1603 = vmatpush.bf16.msra.mxu0 %v1156
  %1604 = vmatmul.bf16.gmra.mxu0 %v341
  %v1605 = vpop.f32.mrf.mxu0
  %v1606 = vadd.f32 %v1587, %v1605
  %v1607 = vpop.f32.mrf.mxu0
  %v1608 = vadd.f32 %v1589, %v1607
  %1609 = vmatmul.bf16.gmra.mxu0 %v354
  %v1610 = vpop.f32.mrf.mxu0
  %v1611 = vadd.f32 %v1592, %v1610
  %v1612 = vpop.f32.mrf.mxu0
  %v1613 = vadd.f32 %v1594, %v1612
  %1614 = vdwg.mxu0
  %1615 = vmatpush.bf16.msra.mxu0 0
  %1616 = vmatpush.bf16.msra.mxu0 0
  %1617 = vmatpush.bf16.msra.mxu0 0
  %1618 = vmatpush.bf16.msra.mxu0 0
  %1619 = vmatpush.bf16.msra.mxu0 %v1178
  %1620 = vmatpush.bf16.msra.mxu0 %v1176
  %1621 = vmatpush.bf16.msra.mxu0 %v1174
  %1622 = vmatpush.bf16.msra.mxu0 %v1172
  %1623 = vmatmul.bf16.gmra.mxu0 %v1382
  %v1624 = vpop.f32.mrf.mxu0
  %v1625 = vadd.f32 %v1606, %v1624
  %v1626 = vpop.f32.mrf.mxu0
  %v1627 = vadd.f32 %v1608, %v1626
  %1628 = vmatmul.bf16.gmra.mxu0 %v1385
  %v1629 = vpop.f32.mrf.mxu0
  %v1630 = vadd.f32 %v1611, %v1629
  %v1631 = vpop.f32.mrf.mxu0
  %v1632 = vadd.f32 %v1613, %v1631
  %1633 = vdwg.mxu0
  %1634 = vmatpush.bf16.msra.mxu0 %v995
  %1635 = vmatpush.bf16.msra.mxu0 %v993
  %1636 = vmatpush.bf16.msra.mxu0 %v991
  %1637 = vmatpush.bf16.msra.mxu0 %v989
  %1638 = vmatpush.bf16.msra.mxu0 %v987
  %1639 = vmatpush.bf16.msra.mxu0 %v985
  %1640 = vmatpush.bf16.msra.mxu0 %v983
  %1641 = vmatpush.bf16.msra.mxu0 %v981
  %1642 = vmatmul.bf16.gmra.mxu0 %v330
  %v1643 = vpop.f32.mrf.mxu0
  %v1644 = vadd.f32 %v249, %v1643
  %v1645 = vpop.f32.mrf.mxu0
  %v1646 = vadd.f32 %v249, %v1645
  %1647 = vmatmul.bf16.gmra.mxu0 %v343
  %v1648 = vpop.f32.mrf.mxu0
  %v1649 = vadd.f32 %v249, %v1648
  %v1650 = vpop.f32.mrf.mxu0
  %v1651 = vadd.f32 %v249, %v1650
  %1652 = vdwg.mxu0
  %1653 = vmatpush.bf16.msra.mxu0 %v1011
  %1654 = vmatpush.bf16.msra.mxu0 %v1009
  %1655 = vmatpush.bf16.msra.mxu0 %v1007
  %1656 = vmatpush.bf16.msra.mxu0 %v1005
  %1657 = vmatpush.bf16.msra.mxu0 %v1003
  %1658 = vmatpush.bf16.msra.mxu0 %v1001
  %1659 = vmatpush.bf16.msra.mxu0 %v999
  %1660 = vmatpush.bf16.msra.mxu0 %v997
  %1661 = vmatmul.bf16.gmra.mxu0 %v331
  %v1662 = vpop.f32.mrf.mxu0
  %v1663 = vadd.f32 %v1644, %v1662
  %v1664 = vpop.f32.mrf.mxu0
  %v1665 = vadd.f32 %v1646, %v1664
  %1666 = vmatmul.bf16.gmra.mxu0 %v344
  %v1667 = vpop.f32.mrf.mxu0
  %v1668 = vadd.f32 %v1649, %v1667
  %v1669 = vpop.f32.mrf.mxu0
  %v1670 = vadd.f32 %v1651, %v1669
  %1671 = vdwg.mxu0
  %1672 = vmatpush.bf16.msra.mxu0 %v1027
  %1673 = vmatpush.bf16.msra.mxu0 %v1025
  %1674 = vmatpush.bf16.msra.mxu0 %v1023
  %1675 = vmatpush.bf16.msra.mxu0 %v1021
  %1676 = vmatpush.bf16.msra.mxu0 %v1019
  %1677 = vmatpush.bf16.msra.mxu0 %v1017
  %1678 = vmatpush.bf16.msra.mxu0 %v1015
  %1679 = vmatpush.bf16.msra.mxu0 %v1013
  %1680 = vmatmul.bf16.gmra.mxu0 %v332
  %v1681 = vpop.f32.mrf.mxu0
  %v1682 = vadd.f32 %v1663, %v1681
  %v1683 = vpop.f32.mrf.mxu0
  %v1684 = vadd.f32 %v1665, %v1683
  %1685 = vmatmul.bf16.gmra.mxu0 %v345
  %v1686 = vpop.f32.mrf.mxu0
  %v1687 = vadd.f32 %v1668, %v1686
  %v1688 = vpop.f32.mrf.mxu0
  %v1689 = vadd.f32 %v1670, %v1688
  %1690 = vdwg.mxu0
  %1691 = vmatpush.bf16.msra.mxu0 %v1043
  %1692 = vmatpush.bf16.msra.mxu0 %v1041
  %1693 = vmatpush.bf16.msra.mxu0 %v1039
  %1694 = vmatpush.bf16.msra.mxu0 %v1037
  %1695 = vmatpush.bf16.msra.mxu0 %v1035
  %1696 = vmatpush.bf16.msra.mxu0 %v1033
  %1697 = vmatpush.bf16.msra.mxu0 %v1031
  %1698 = vmatpush.bf16.msra.mxu0 %v1029
  %1699 = vmatmul.bf16.gmra.mxu0 %v333
  %v1700 = vpop.f32.mrf.mxu0
  %v1701 = vadd.f32 %v1682, %v1700
  %v1702 = vpop.f32.mrf.mxu0
  %v1703 = vadd.f32 %v1684, %v1702
  %1704 = vmatmul.bf16.gmra.mxu0 %v346
  %v1705 = vpop.f32.mrf.mxu0
  %v1706 = vadd.f32 %v1687, %v1705
  %v1707 = vpop.f32.mrf.mxu0
  %v1708 = vadd.f32 %v1689, %v1707
  %1709 = vdwg.mxu0
  %1710 = vmatpush.bf16.msra.mxu0 %v1059
  %1711 = vmatpush.bf16.msra.mxu0 %v1057
  %1712 = vmatpush.bf16.msra.mxu0 %v1055
  %1713 = vmatpush.bf16.msra.mxu0 %v1053
  %1714 = vmatpush.bf16.msra.mxu0 %v1051
  %1715 = vmatpush.bf16.msra.mxu0 %v1049
  %1716 = vmatpush.bf16.msra.mxu0 %v1047
  %1717 = vmatpush.bf16.msra.mxu0 %v1045
  %1718 = vmatmul.bf16.gmra.mxu0 %v334
  %v1719 = vpop.f32.mrf.mxu0
  %v1720 = vadd.f32 %v1701, %v1719
  %v1721 = vpop.f32.mrf.mxu0
  %v1722 = vadd.f32 %v1703, %v1721
  %1723 = vmatmul.bf16.gmra.mxu0 %v347
  %v1724 = vpop.f32.mrf.mxu0
  %v1725 = vadd.f32 %v1706, %v1724
  %v1726 = vpop.f32.mrf.mxu0
  %v1727 = vadd.f32 %v1708, %v1726
  %1728 = vdwg.mxu0
  %1729 = vmatpush.bf16.msra.mxu0 %v1075
  %1730 = vmatpush.bf16.msra.mxu0 %v1073
  %1731 = vmatpush.bf16.msra.mxu0 %v1071
  %1732 = vmatpush.bf16.msra.mxu0 %v1069
  %1733 = vmatpush.bf16.msra.mxu0 %v1067
  %1734 = vmatpush.bf16.msra.mxu0 %v1065
  %1735 = vmatpush.bf16.msra.mxu0 %v1063
  %1736 = vmatpush.bf16.msra.mxu0 %v1061
  %1737 = vmatmul.bf16.gmra.mxu0 %v335
  %v1738 = vpop.f32.mrf.mxu0
  %v1739 = vadd.f32 %v1720, %v1738
  %v1740 = vpop.f32.mrf.mxu0
  %v1741 = vadd.f32 %v1722, %v1740
  %1742 = vmatmul.bf16.gmra.mxu0 %v348
  %v1743 = vpop.f32.mrf.mxu0
  %v1744 = vadd.f32 %v1725, %v1743
  %v1745 = vpop.f32.mrf.mxu0
  %v1746 = vadd.f32 %v1727, %v1745
  %1747 = vdwg.mxu0
  %1748 = vmatpush.bf16.msra.mxu0 %v1091
  %1749 = vmatpush.bf16.msra.mxu0 %v1089
  %1750 = vmatpush.bf16.msra.mxu0 %v1087
  %1751 = vmatpush.bf16.msra.mxu0 %v1085
  %1752 = vmatpush.bf16.msra.mxu0 %v1083
  %1753 = vmatpush.bf16.msra.mxu0 %v1081
  %1754 = vmatpush.bf16.msra.mxu0 %v1079
  %1755 = vmatpush.bf16.msra.mxu0 %v1077
  %1756 = vmatmul.bf16.gmra.mxu0 %v336
  %v1757 = vpop.f32.mrf.mxu0
  %v1758 = vadd.f32 %v1739, %v1757
  %v1759 = vpop.f32.mrf.mxu0
  %v1760 = vadd.f32 %v1741, %v1759
  %1761 = vmatmul.bf16.gmra.mxu0 %v349
  %v1762 = vpop.f32.mrf.mxu0
  %v1763 = vadd.f32 %v1744, %v1762
  %v1764 = vpop.f32.mrf.mxu0
  %v1765 = vadd.f32 %v1746, %v1764
  %1766 = vdwg.mxu0
  %1767 = vmatpush.bf16.msra.mxu0 %v1107
  %1768 = vmatpush.bf16.msra.mxu0 %v1105
  %1769 = vmatpush.bf16.msra.mxu0 %v1103
  %1770 = vmatpush.bf16.msra.mxu0 %v1101
  %1771 = vmatpush.bf16.msra.mxu0 %v1099
  %1772 = vmatpush.bf16.msra.mxu0 %v1097
  %1773 = vmatpush.bf16.msra.mxu0 %v1095
  %1774 = vmatpush.bf16.msra.mxu0 %v1093
  %1775 = vmatmul.bf16.gmra.mxu0 %v337
  %v1776 = vpop.f32.mrf.mxu0
  %v1777 = vadd.f32 %v1758, %v1776
  %v1778 = vpop.f32.mrf.mxu0
  %v1779 = vadd.f32 %v1760, %v1778
  %1780 = vmatmul.bf16.gmra.mxu0 %v350
  %v1781 = vpop.f32.mrf.mxu0
  %v1782 = vadd.f32 %v1763, %v1781
  %v1783 = vpop.f32.mrf.mxu0
  %v1784 = vadd.f32 %v1765, %v1783
  %1785 = vdwg.mxu0
  %1786 = vmatpush.bf16.msra.mxu0 %v1123
  %1787 = vmatpush.bf16.msra.mxu0 %v1121
  %1788 = vmatpush.bf16.msra.mxu0 %v1119
  %1789 = vmatpush.bf16.msra.mxu0 %v1117
  %1790 = vmatpush.bf16.msra.mxu0 %v1115
  %1791 = vmatpush.bf16.msra.mxu0 %v1113
  %1792 = vmatpush.bf16.msra.mxu0 %v1111
  %1793 = vmatpush.bf16.msra.mxu0 %v1109
  %1794 = vmatmul.bf16.gmra.mxu0 %v338
  %v1795 = vpop.f32.mrf.mxu0
  %v1796 = vadd.f32 %v1777, %v1795
  %v1797 = vpop.f32.mrf.mxu0
  %v1798 = vadd.f32 %v1779, %v1797
  %1799 = vmatmul.bf16.gmra.mxu0 %v351
  %v1800 = vpop.f32.mrf.mxu0
  %v1801 = vadd.f32 %v1782, %v1800
  %v1802 = vpop.f32.mrf.mxu0
  %v1803 = vadd.f32 %v1784, %v1802
  %1804 = vdwg.mxu0
  %1805 = vmatpush.bf16.msra.mxu0 %v1139
  %1806 = vmatpush.bf16.msra.mxu0 %v1137
  %1807 = vmatpush.bf16.msra.mxu0 %v1135
  %1808 = vmatpush.bf16.msra.mxu0 %v1133
  %1809 = vmatpush.bf16.msra.mxu0 %v1131
  %1810 = vmatpush.bf16.msra.mxu0 %v1129
  %1811 = vmatpush.bf16.msra.mxu0 %v1127
  %1812 = vmatpush.bf16.msra.mxu0 %v1125
  %1813 = vmatmul.bf16.gmra.mxu0 %v339
  %v1814 = vpop.f32.mrf.mxu0
  %v1815 = vadd.f32 %v1796, %v1814
  %v1816 = vpop.f32.mrf.mxu0
  %v1817 = vadd.f32 %v1798, %v1816
  %1818 = vmatmul.bf16.gmra.mxu0 %v352
  %v1819 = vpop.f32.mrf.mxu0
  %v1820 = vadd.f32 %v1801, %v1819
  %v1821 = vpop.f32.mrf.mxu0
  %v1822 = vadd.f32 %v1803, %v1821
  %1823 = vdwg.mxu0
  %1824 = vmatpush.bf16.msra.mxu0 %v1155
  %1825 = vmatpush.bf16.msra.mxu0 %v1153
  %1826 = vmatpush.bf16.msra.mxu0 %v1151
  %1827 = vmatpush.bf16.msra.mxu0 %v1149
  %1828 = vmatpush.bf16.msra.mxu0 %v1147
  %1829 = vmatpush.bf16.msra.mxu0 %v1145
  %1830 = vmatpush.bf16.msra.mxu0 %v1143
  %1831 = vmatpush.bf16.msra.mxu0 %v1141
  %1832 = vmatmul.bf16.gmra.mxu0 %v340
  %v1833 = vpop.f32.mrf.mxu0
  %v1834 = vadd.f32 %v1815, %v1833
  %v1835 = vpop.f32.mrf.mxu0
  %v1836 = vadd.f32 %v1817, %v1835
  %1837 = vmatmul.bf16.gmra.mxu0 %v353
  %v1838 = vpop.f32.mrf.mxu0
  %v1839 = vadd.f32 %v1820, %v1838
  %v1840 = vpop.f32.mrf.mxu0
  %v1841 = vadd.f32 %v1822, %v1840
  %1842 = vdwg.mxu0
  %1843 = vmatpush.bf16.msra.mxu0 %v1171
  %1844 = vmatpush.bf16.msra.mxu0 %v1169
  %1845 = vmatpush.bf16.msra.mxu0 %v1167
  %1846 = vmatpush.bf16.msra.mxu0 %v1165
  %1847 = vmatpush.bf16.msra.mxu0 %v1163
  %1848 = vmatpush.bf16.msra.mxu0 %v1161
  %1849 = vmatpush.bf16.msra.mxu0 %v1159
  %1850 = vmatpush.bf16.msra.mxu0 %v1157
  %1851 = vmatmul.bf16.gmra.mxu0 %v341
  %v1852 = vpop.f32.mrf.mxu0
  %v1853 = vadd.f32 %v1834, %v1852
  %v1854 = vpop.f32.mrf.mxu0
  %v1855 = vadd.f32 %v1836, %v1854
  %1856 = vmatmul.bf16.gmra.mxu0 %v354
  %v1857 = vpop.f32.mrf.mxu0
  %v1858 = vadd.f32 %v1839, %v1857
  %v1859 = vpop.f32.mrf.mxu0
  %v1860 = vadd.f32 %v1841, %v1859
  %1861 = vdwg.mxu0
  %1862 = vmatpush.bf16.msra.mxu0 0
  %1863 = vmatpush.bf16.msra.mxu0 0
  %1864 = vmatpush.bf16.msra.mxu0 0
  %1865 = vmatpush.bf16.msra.mxu0 0
  %1866 = vmatpush.bf16.msra.mxu0 %v1179
  %1867 = vmatpush.bf16.msra.mxu0 %v1177
  %1868 = vmatpush.bf16.msra.mxu0 %v1175
  %1869 = vmatpush.bf16.msra.mxu0 %v1173
  %1870 = vmatmul.bf16.gmra.mxu0 %v1382
  %v1871 = vpop.f32.mrf.mxu0
  %v1872 = vadd.f32 %v1853, %v1871
  %v1873 = vpop.f32.mrf.mxu0
  %v1874 = vadd.f32 %v1855, %v1873
  %1875 = vmatmul.bf16.gmra.mxu0 %v1385
  %v1876 = vpop.f32.mrf.mxu0
  %v1877 = vadd.f32 %v1858, %v1876
  %v1878 = vpop.f32.mrf.mxu0
  %v1879 = vadd.f32 %v1860, %v1878
  %1880 = vdwg.mxu0
  %v1881 = vmul.f32 %v1625, %v1625
  %v1882 = vmul.f32 %v1872, %v1872
  %v1883 = vmul.f32 %v1627, %v1627
  %v1884 = vmul.f32 %v1874, %v1874
  %v1885 = vmul.f32 %v1630, %v1630
  %v1886 = vmul.f32 %v1877, %v1877
  %v1887 = vmul.f32 %v1632, %v1632
  %v1888 = vmul.f32 %v1879, %v1879
  %v1889 = vadd.f32 %v1625, %v1627
  %v1890 = vrot.slane %v1889, 4
  %v1891 = vadd.f32 %v1889, %v1890
  %v1892 = vrot.slane %v1891, 2
  %v1893 = vadd.f32 %v1891, %v1892
  %v1894 = vrot.slane %v1893, 1
  %v1895 = vadd.f32 %v1893, %v1894
  %v1896 = vadd.f32 %v1872, %v1874
  %v1897 = vrot.slane %v1896, 4
  %v1898 = vadd.f32 %v1896, %v1897
  %v1899 = vrot.slane %v1898, 2
  %v1900 = vadd.f32 %v1898, %v1899
  %v1901 = vrot.slane %v1900, 1
  %v1902 = vadd.f32 %v1900, %v1901
  %v1903 = vadd.f32 %v1881, %v1883
  %v1904 = vrot.slane %v1903, 4
  %v1905 = vadd.f32 %v1903, %v1904
  %v1906 = vrot.slane %v1905, 2
  %v1907 = vadd.f32 %v1905, %v1906
  %v1908 = vrot.slane %v1907, 1
  %v1909 = vadd.f32 %v1907, %v1908
  %v1910 = vadd.f32 %v1882, %v1884
  %v1911 = vrot.slane %v1910, 4
  %v1912 = vadd.f32 %v1910, %v1911
  %v1913 = vrot.slane %v1912, 2
  %v1914 = vadd.f32 %v1912, %v1913
  %v1915 = vrot.slane %v1914, 1
  %v1916 = vadd.f32 %v1914, %v1915
  %v1917 = vadd.f32 %v1630, %v1632
  %v1918 = vrot.slane %v1917, 4
  %v1919 = vadd.f32 %v1917, %v1918
  %v1920 = vrot.slane %v1919, 2
  %v1921 = vadd.f32 %v1919, %v1920
  %v1922 = vrot.slane %v1921, 1
  %v1923 = vadd.f32 %v1921, %v1922
  %v1924 = vadd.f32 %v1877, %v1879
  %v1925 = vrot.slane %v1924, 4
  %v1926 = vadd.f32 %v1924, %v1925
  %v1927 = vrot.slane %v1926, 2
  %v1928 = vadd.f32 %v1926, %v1927
  %v1929 = vrot.slane %v1928, 1
  %v1930 = vadd.f32 %v1928, %v1929
  %v1931 = vadd.f32 %v1885, %v1887
  %v1932 = vrot.slane %v1931, 4
  %v1933 = vadd.f32 %v1931, %v1932
  %v1934 = vrot.slane %v1933, 2
  %v1935 = vadd.f32 %v1933, %v1934
  %v1936 = vrot.slane %v1935, 1
  %v1937 = vadd.f32 %v1935, %v1936
  %v1938 = vadd.f32 %v1886, %v1888
  %v1939 = vrot.slane %v1938, 4
  %v1940 = vadd.f32 %v1938, %v1939
  %v1941 = vrot.slane %v1940, 2
  %v1942 = vadd.f32 %v1940, %v1941
  %v1943 = vrot.slane %v1942, 1
  %v1944 = vadd.f32 %v1942, %v1943
  %vm1945 = vcmask 1040384
  %v1946 = vsel %vm1945, %v1895, %v1909
  %v1947 = vsel %vm1945, %v1902, %v1916
  %vm1948 = vcmask 1041408
  %v1949 = vsel %vm1948, %v1946, %v1923
  %v1950 = vsel %vm1948, %v1947, %v1930
  %vm1951 = vcmask 1042432
  %v1952 = vsel %vm1951, %v1949, %v1937
  %v1953 = vsel %vm1951, %v1950, %v1944
  %v1954 = vld [vmem:[%s2] sm:$0xff]
  %v1955 = vld [vmem:[%s2 + $0x8] sm:$0xff]
  %v1956 = vld [vmem:[%s2 + $0x10] sm:$0xff]
  %v1957 = vld [vmem:[%s2 + $0x18] sm:$0xff]
  %v1958 = vld [vmem:[%s2 + $0x20] sm:$0xff]
  %v1959 = vld [vmem:[%s2 + $0x28] sm:$0xff]
  %v1960 = vld [vmem:[%s2 + $0x30] sm:$0xff]
  %v1961 = vld [vmem:[%s2 + $0x38] sm:$0xff]
  %v1962 = vld [vmem:[%s2 + $0x40] sm:$0xff]
  %v1963 = vld [vmem:[%s2 + $0x48] sm:$0xff]
  %v1964 = vld [vmem:[%s2 + $0x50] sm:$0xff]
  %v1965 = vld [vmem:[%s2 + $0x58] sm:$0xff]
  %v1966 = vld [vmem:[%s2 + $0x60] sm:$0xff]
  %v1967 = vld [vmem:[%s2 + $0x68] sm:$0xff]
  %v1968 = vld [vmem:[%s2 + $0x70] sm:$0xff]
  %v1969 = vld [vmem:[%s2 + $0x78] sm:$0xff]
  %v1970 = vld [vmem:[%s2 + $0x80] sm:$0xff]
  %v1971 = vld [vmem:[%s2 + $0x88] sm:$0xff]
  %v1972 = vld [vmem:[%s2 + $0x90] sm:$0xff]
  %v1973 = vld [vmem:[%s2 + $0x98] sm:$0xff]
  %v1974 = vld [vmem:[%s2 + $0xa0] sm:$0xff]
  %v1975 = vld [vmem:[%s2 + $0xa8] sm:$0xff]
  %v1976 = vld [vmem:[%s2 + $0xb0] sm:$0xff]
  %v1977 = vld [vmem:[%s2 + $0xb8] sm:$0xff]
  %v1978 = vld [vmem:[%s2 + $0xc0] sm:$0xff]
  %v1979 = vld [vmem:[%s2 + $0xc8] sm:$0xff]
  %v1980 = vld [vmem:[%s2 + $0xd0] sm:$0xff]
  %v1981 = vld [vmem:[%s2 + $0xd8] sm:$0xff]
  %v1982 = vld [vmem:[%s2 + $0xe0] sm:$0xff]
  %v1983 = vld [vmem:[%s2 + $0xe8] sm:$0xff]
  %v1984 = vld [vmem:[%s2 + $0xf0] sm:$0xff]
  %v1985 = vld [vmem:[%s2 + $0xf8] sm:$0xff]
  %v1986 = vld [vmem:[%s2 + $0x100] sm:$0xff]
  %v1987 = vld [vmem:[%s2 + $0x108] sm:$0xff]
  %v1988 = vld [vmem:[%s2 + $0x110] sm:$0xff]
  %v1989 = vld [vmem:[%s2 + $0x118] sm:$0xff]
  %v1990 = vld [vmem:[%s2 + $0x120] sm:$0xff]
  %v1991 = vld [vmem:[%s2 + $0x128] sm:$0xff]
  %v1992 = vld [vmem:[%s2 + $0x130] sm:$0xff]
  %v1993 = vld [vmem:[%s2 + $0x138] sm:$0xff]
  %v1994 = vld [vmem:[%s2 + $0x140] sm:$0xff]
  %v1995 = vld [vmem:[%s2 + $0x148] sm:$0xff]
  %v1996 = vld [vmem:[%s2 + $0x150] sm:$0xff]
  %v1997 = vld [vmem:[%s2 + $0x158] sm:$0xff]
  %v1998 = vld [vmem:[%s2 + $0x160] sm:$0xff]
  %v1999 = vld [vmem:[%s2 + $0x168] sm:$0xff]
  %v2000 = vld [vmem:[%s2 + $0x170] sm:$0xff]
  %v2001 = vld [vmem:[%s2 + $0x178] sm:$0xff]
  %v2002 = vld [vmem:[%s2 + $0x180] sm:$0xff]
  %v2003 = vld [vmem:[%s2 + $0x188] sm:$0xff]
  %v2004 = vld [vmem:[%s2 + $0x190] sm:$0xff]
  %v2005 = vld [vmem:[%s2 + $0x198] sm:$0xff]
  %v2006 = vld [vmem:[%s2 + $0x1a0] sm:$0xff]
  %v2007 = vld [vmem:[%s2 + $0x1a8] sm:$0xff]
  %v2008 = vld [vmem:[%s2 + $0x1b0] sm:$0xff]
  %v2009 = vld [vmem:[%s2 + $0x1b8] sm:$0xff]
  %v2010 = vld [vmem:[%s2 + $0x1c0] sm:$0xff]
  %v2011 = vld [vmem:[%s2 + $0x1c8] sm:$0xff]
  %v2012 = vld [vmem:[%s2 + $0x1d0] sm:$0xff]
  %v2013 = vld [vmem:[%s2 + $0x1d8] sm:$0xff]
  %v2014 = vld [vmem:[%s2 + $0x1e0] sm:$0xff]
  %v2015 = vld [vmem:[%s2 + $0x1e8] sm:$0xff]
  %v2016 = vld [vmem:[%s2 + $0x1f0] sm:$0xff]
  %v2017 = vld [vmem:[%s2 + $0x1f8] sm:$0xff]
  %2018 = vmatpush.msra.mxu0 %v1984
  %2019 = vmatpush.msra.mxu0 %v1982
  %2020 = vmatpush.msra.mxu0 %v1980
  %2021 = vmatpush.msra.mxu0 %v1978
  %2022 = vmatpush.msra.mxu0 %v1976
  %2023 = vmatpush.msra.mxu0 %v1974
  %2024 = vmatpush.msra.mxu0 %v1972
  %2025 = vmatpush.msra.mxu0 %v1970
  %2026 = vmatpush.msra.mxu0 %v1968
  %2027 = vmatpush.msra.mxu0 %v1966
  %2028 = vmatpush.msra.mxu0 %v1964
  %2029 = vmatpush.msra.mxu0 %v1962
  %2030 = vmatpush.msra.mxu0 %v1960
  %2031 = vmatpush.msra.mxu0 %v1958
  %2032 = vmatpush.msra.mxu0 %v1956
  %2033 = vmatpush.msra.mxu0 %v1954
  %2034 = vmatmul.f32.gmra.mxu0 %v1952
  %v2035 = vpop.f32.mrf.mxu0
  %v2036 = vadd.f32 0.0, %v2035
  %2037 = vdwg.mxu0
  %2038 = vmatpush.msra.mxu0 %v2016
  %2039 = vmatpush.msra.mxu0 %v2014
  %2040 = vmatpush.msra.mxu0 %v2012
  %2041 = vmatpush.msra.mxu0 %v2010
  %2042 = vmatpush.msra.mxu0 %v2008
  %2043 = vmatpush.msra.mxu0 %v2006
  %2044 = vmatpush.msra.mxu0 %v2004
  %2045 = vmatpush.msra.mxu0 %v2002
  %2046 = vmatpush.msra.mxu0 %v2000
  %2047 = vmatpush.msra.mxu0 %v1998
  %2048 = vmatpush.msra.mxu0 %v1996
  %2049 = vmatpush.msra.mxu0 %v1994
  %2050 = vmatpush.msra.mxu0 %v1992
  %2051 = vmatpush.msra.mxu0 %v1990
  %2052 = vmatpush.msra.mxu0 %v1988
  %2053 = vmatpush.msra.mxu0 %v1986
  %2054 = vmatmul.f32.gmra.mxu0 %v1953
  %v2055 = vpop.f32.mrf.mxu0
  %v2056 = vadd.f32 %v2036, %v2055
  %2057 = vdwg.mxu0
  %2058 = vmatpush.msra.mxu0 %v1985
  %2059 = vmatpush.msra.mxu0 %v1983
  %2060 = vmatpush.msra.mxu0 %v1981
  %2061 = vmatpush.msra.mxu0 %v1979
  %2062 = vmatpush.msra.mxu0 %v1977
  %2063 = vmatpush.msra.mxu0 %v1975
  %2064 = vmatpush.msra.mxu0 %v1973
  %2065 = vmatpush.msra.mxu0 %v1971
  %2066 = vmatpush.msra.mxu0 %v1969
  %2067 = vmatpush.msra.mxu0 %v1967
  %2068 = vmatpush.msra.mxu0 %v1965
  %2069 = vmatpush.msra.mxu0 %v1963
  %2070 = vmatpush.msra.mxu0 %v1961
  %2071 = vmatpush.msra.mxu0 %v1959
  %2072 = vmatpush.msra.mxu0 %v1957
  %2073 = vmatpush.msra.mxu0 %v1955
  %2074 = vmatmul.f32.gmra.mxu0 %v1952
  %v2075 = vpop.f32.mrf.mxu0
  %v2076 = vadd.f32 0.0, %v2075
  %2077 = vdwg.mxu0
  %2078 = vmatpush.msra.mxu0 %v2017
  %2079 = vmatpush.msra.mxu0 %v2015
  %2080 = vmatpush.msra.mxu0 %v2013
  %2081 = vmatpush.msra.mxu0 %v2011
  %2082 = vmatpush.msra.mxu0 %v2009
  %2083 = vmatpush.msra.mxu0 %v2007
  %2084 = vmatpush.msra.mxu0 %v2005
  %2085 = vmatpush.msra.mxu0 %v2003
  %2086 = vmatpush.msra.mxu0 %v2001
  %2087 = vmatpush.msra.mxu0 %v1999
  %2088 = vmatpush.msra.mxu0 %v1997
  %2089 = vmatpush.msra.mxu0 %v1995
  %2090 = vmatpush.msra.mxu0 %v1993
  %2091 = vmatpush.msra.mxu0 %v1991
  %2092 = vmatpush.msra.mxu0 %v1989
  %2093 = vmatpush.msra.mxu0 %v1987
  %2094 = vmatmul.f32.gmra.mxu0 %v1953
  %v2095 = vpop.f32.mrf.mxu0
  %v2096 = vadd.f32 %v2076, %v2095
  %2097 = vdwg.mxu0
  %v2098 = vmul.f32 %v2056, %v2056
  %v2099 = vmul.f32 %v2096, %v2096
  %v2102 = vrot.slane %v2098, 7
  %v2103 = vrot.slane %v2099, 7
  %v2106 = vsub.f32 %v2056, %v2102
  %v2107 = vsub.f32 %v2096, %v2103
  %v2108 = vadd.f32 %v2106, 1e-05
  %v2109 = vadd.f32 %v2107, 1e-05
  %v2110 = vrsqrt.pop %v2108
  %v2111 = vmul.f32 %v2110, %v2108
  %v2112 = vmul.f32 %v2111, %v2110
  %v2113 = vmul.f32 0.5, %v2112
  %v2114 = vsub.f32 1.5, %v2113
  %v2115 = vmul.f32 %v2110, %v2114
  %vm2116 = vweird.f32 %v2108
  %vm2117 = vweird.f32 %v2110
  %vm2118 = vmor %vm2116, %vm2117
  %v2119 = vsel %vm2118, %v2110, %v2115
  %v2120 = vrsqrt.pop %v2109
  %v2121 = vmul.f32 %v2120, %v2109
  %v2122 = vmul.f32 %v2121, %v2120
  %v2123 = vmul.f32 0.5, %v2122
  %v2124 = vsub.f32 1.5, %v2123
  %v2125 = vmul.f32 %v2120, %v2124
  %vm2126 = vweird.f32 %v2109
  %vm2127 = vweird.f32 %v2120
  %vm2128 = vmor %vm2126, %vm2127
  %v2129 = vsel %vm2128, %v2120, %v2125
  %v2130 = vmul.f32 %v2119, %v18
  %v2131 = vmul.f32 %v2129, %v19
  %v2134 = vrot.slane %v2130, 1
  %v2135 = vrot.slane %v2131, 1
  %v2138 = vmul.f32 %v2056, %v2134
  %v2139 = vmul.f32 %v2096, %v2135
  %v2142 = vrot.slane %v2138, 6
  %v2143 = vrot.slane %v2139, 6
  %v2146 = vsub.f32 %v18, %v2142
  %v2147 = vsub.f32 %v19, %v2143
  %v2148 = vperm.slane %v2130, 1
  %v2149 = vperm.slane %v2131, 1
  %v2150 = vmul.f32 %v1625, %v2148
  %v2151 = vmul.f32 %v1872, %v2149
  %v2152 = vmul.f32 %v1627, %v2148
  %v2153 = vmul.f32 %v1874, %v2149
  %v2154 = vperm.slane %v2146, 2
  %v2155 = vperm.slane %v2147, 2
  %v2156 = vadd.f32 %v2150, %v2154
  %v2157 = vadd.f32 %v2151, %v2155
  %v2158 = vadd.f32 %v2152, %v2154
  %v2159 = vadd.f32 %v2153, %v2155
  %v2160 = vmax.f32 %v2156, 0.0
  %v2161 = vmax.f32 %v2157, 0.0
  %v2162 = vmax.f32 %v2158, 0.0
  %v2163 = vmax.f32 %v2159, 0.0
  %v2166 = vrot.slane %v18, 6
  %v2167 = vrot.slane %v19, 6
  %v2170 = vmul.f32 %v2119, %v2166
  %v2171 = vmul.f32 %v2129, %v2167
  %v2174 = vrot.slane %v2170, 1
  %v2175 = vrot.slane %v2171, 1
  %v2178 = vmul.f32 %v2056, %v2174
  %v2179 = vmul.f32 %v2096, %v2175
  %v2180 = vsub.f32 %v18, %v2178
  %v2181 = vsub.f32 %v19, %v2179
  %v2182 = vperm.slane %v2170, 3
  %v2183 = vperm.slane %v2171, 3
  %v2184 = vmul.f32 %v1630, %v2182
  %v2185 = vmul.f32 %v1877, %v2183
  %v2186 = vmul.f32 %v1632, %v2182
  %v2187 = vmul.f32 %v1879, %v2183
  %v2188 = vperm.slane %v2180, 2
  %v2189 = vperm.slane %v2181, 2
  %v2190 = vadd.f32 %v2184, %v2188
  %v2191 = vadd.f32 %v2185, %v2189
  %v2192 = vadd.f32 %v2186, %v2188
  %v2193 = vadd.f32 %v2187, %v2189
  %v2194 = vmax.f32 %v2190, 0.0
  %v2195 = vmax.f32 %v2191, 0.0
  %v2196 = vmax.f32 %v2192, 0.0
  %v2197 = vmax.f32 %v2193, 0.0
  %2198 = vst [vmem:[%s4] sm:$0xff] %v2160
  %2199 = vst [vmem:[%s4 + $0x8] sm:$0xff] %v2161
  %2200 = vst [vmem:[%s4 + $0x10] sm:$0xff] %v2162
  %2201 = vst [vmem:[%s4 + $0x18] sm:$0xff] %v2163
  %2202 = vst [vmem:[%s4 + $0x20] sm:$0xff] %v2194
  %2203 = vst [vmem:[%s4 + $0x28] sm:$0xff] %v2195
  %2204 = vst [vmem:[%s4 + $0x30] sm:$0xff] %v2196
  %2205 = vst [vmem:[%s4 + $0x38] sm:$0xff] %v2197
  // Predicated region
  $region18: #{inspired_block.1} parent=0 // pred_check
    _
  $region19: #{inspired_block.1} parent=0 // pred_check_branch
    %2207 = sbr.rel (0) target = $region21
  $region20: #{inspired_block.1} parent=0 // pred_region
    _
  $region21: #{inspired_block.1} parent=0 // pred_fallthru
    _
  // Predicated region
  $region22: #{inspired_block.1} parent=0 // pred_check
    _
  $region23: #{inspired_block.1} parent=0 // pred_check_branch
    %2209 = sbr.rel (0) target = $region25
  $region24: #{inspired_block.1} parent=0 // pred_region
    _
  $region25: #{inspired_block.1} parent=0 // pred_fallthru
    _

</llo_original>
